<compile_context>
chip_gen: v6e
topology: v6e:2x2x1
jax: 0.10.0
libtpu: 0.0.40
codegen_flags: <defaults>
</compile_context>

<pallas_src>
import numpy as np
import jax
import jax.numpy as jnp
from jax import lax
from jax.experimental import pallas as pl
from jax.experimental.pallas import tpu as pltpu


# --------------------------------------------------------------------------- #
# Pallas kernel (B images per grid step, packed along the lane axis)
# --------------------------------------------------------------------------- #
def _make_object_cell_kernel(taps, cin_pad, cout, bhw, d_big, d0, ly, k1, k2):
    base = d_big - d0   # lane offset of "tap 0" inside the halo-extended buffer

    def kernel(xe_ref, w1_ref, w2_ref, pv_ref, mask_ref, out_ref,
               pim_ref, y_ref):
        # per-channel params as (Cout, 1) columns -> broadcast over lanes (f32)
        b1, a1 = pv_ref[:, 0:1], pv_ref[:, 1:2]
        b2, a2 = pv_ref[:, 2:3], pv_ref[:, 3:4]
        bn_s, bias = pv_ref[:, 4:5], pv_ref[:, 5:6]

        # ---- conv1 (+ fused bypass 1x1) ------------------------------------
        # im2col: one lane-shifted slice per tap covering ALL B images at once;
        # cin_pad is a multiple of 8 and bhw a multiple of 128, so every store
        # is a full, unmasked sublane/lane-tile store.
        for t, off in enumerate(taps):
            pim_ref[t * cin_pad:(t + 1) * cin_pad, :] = \
                xe_ref[:, base + off: base + off + bhw]
        r1 = jnp.dot(w1_ref[...], pim_ref[0:k1, :],
                     preferred_element_type=jnp.float32)
        byp = r1[cout:, :]                               # fused bypass rows
        z1 = r1[0:cout, :] + b1
        z1 = jnp.where(z1 >= 0.0, z1, a1 * z1)           # PReLU 1 (f32)

        # ---- conv2 input: masked conv1 activation with a zero halo ----------
        # Halo stores are single aligned 128-lane tiles, re-written every step:
        # no persistent-scratch assumptions (safe under "parallel"/megacore).
        y_ref[:, 0:d_big] = jnp.zeros((cout, d_big), jnp.float32)
        y_ref[:, d_big + bhw:ly] = jnp.zeros((cout, ly - d_big - bhw),
                                             jnp.float32)
        y_ref[:, d_big:d_big + bhw] = z1 * mask_ref[...]  # zero the 'same' ring

        # ---- conv2: im2col from y, ONE fused MXU matmul ----------------------
        # (re-uses the same scratch buffer; conv1's operand was already read)
        for t, off in enumerate(taps):
            pim_ref[t * cout:(t + 1) * cout, :] = \
                y_ref[:, base + off: base + off + bhw]
        z2 = jnp.dot(w2_ref[...], pim_ref[0:k2, :],
                     preferred_element_type=jnp.float32) + b2
        z2 = jnp.where(z2 >= 0.0, z2, a2 * z2)           # PReLU 2 (f32)

        # ---- folded BatchNorm affine + bypass residual (Dropout = identity) -
        out_ref[...] = z2 * bn_s + byp + bias

    return kernel


# --------------------------------------------------------------------------- #
# Parameter massaging helpers (host-side, done once)
# --------------------------------------------------------------------------- #
def _dense_tap_weights(w, groups):
    """torch grouped-conv weight (Cout, Cin/groups, KH, KW) -> dense
       block-diagonal per-tap weights of shape (Cout, KH*KW, Cin)."""
    w = np.asarray(w, np.float32)
    cout, cinpg, kh, kw = w.shape
    coutpg = cout // groups
    cin = cinpg * groups
    dense = np.zeros((cout, kh * kw, cin), np.float32)
    for c in range(cout):
        g = c // coutpg
        dense[c, :, g * cinpg:(g + 1) * cinpg] = \
            w[c].transpose(1, 2, 0).reshape(kh * kw, cinpg)
    return dense


def _choose_batch_block(n):
    # keep >=2 grid steps so a v7x megacore has work for both TensorCores,
    # cap B so the working set stays well inside the 32 MiB scoped VMEM
    # default on all generations (~0.3 MiB per image per step).
    if n <= 1:
        return 1
    return min(32, (n + 1) // 2)


# --------------------------------------------------------------------------- #
# Wrapper: packing + pallas_call
# --------------------------------------------------------------------------- #
def object_cell_forward(x_nchw, params, groups, *, batch_block=None):
    N, Cin, H, W = x_nchw.shape
    Cout, _, KH, KW = params['w1'].shape
    assert KH % 2 == 1 and KW % 2 == 1, "padding='same' implemented for odd kernels"
    ph, pw = KH // 2, KW // 2
    Hp, Wp = H + 2 * ph, W + 2 * pw
    HW = Hp * Wp
    HWp = -(-HW // 128) * 128            # per-image lane length, multiple of 128
    d0 = ph * Wp + pw                    # conv halo width in flattened coords
    D0 = max(128, -(-d0 // 128) * 128)   # halo rounded up to a full lane tile
    CIN_PAD = -(-Cin // 8) * 8           # sublane-pad input channels (f32 tile)

    if batch_block is None:
        batch_block = _choose_batch_block(N)
    B = max(1, min(batch_block, N))
    G = -(-N // B)                       # grid steps (batch groups)
    Npad = G * B
    BHW = B * HWp
    Lx = BHW + 2 * D0                    # halo-extended packed lane length
    Ly = BHW + 2 * D0
    K1 = KH * KW * CIN_PAD
    K2 = KH * KW * Cout
    taps = [kh * Wp + kw for kh in range(KH) for kw in range(KW)]
    t_center = ph * KW + pw

    # ---- weights: grouped -> dense block-diag, taps fused on the K axis -----
    d1 = _dense_tap_weights(params['w1'], groups)              # (Cout, 9, Cin)
    d2 = _dense_tap_weights(params['w2'], groups)              # (Cout, 9, Cout)
    w1pad = np.zeros((Cout, KH * KW, CIN_PAD), np.float32)
    w1pad[:, :, :Cin] = d1
    wbp = np.asarray(params['wbp'], np.float32).reshape(Cout, Cin)
    wbppad = np.zeros((Cout, KH * KW, CIN_PAD), np.float32)
    wbppad[:, t_center, :Cin] = wbp                            # bypass = centre tap
    w1big = jnp.asarray(np.concatenate([w1pad.reshape(Cout, K1),
                                        wbppad.reshape(Cout, K1)], axis=0))
    w2big = jnp.asarray(d2.reshape(Cout, K2))

    # ---- fold BatchNorm (inference) + bypass bias into one per-channel affine
    eps = 1e-5
    bn_scale = params['gamma'] / jnp.sqrt(params['rvar'] + eps)
    bias_final = params['beta'] - params['rmean'] * bn_scale + params['bbp']
    a1 = jnp.broadcast_to(jnp.reshape(params['a1'], (-1,)), (Cout,))
    a2 = jnp.broadcast_to(jnp.reshape(params['a2'], (-1,)), (Cout,))
    pvec = jnp.stack([params['b1'], a1, params['b2'], a2,
                      bn_scale, bias_final], axis=1).astype(jnp.float32)

    # ---- interior mask (zeros the 'same' ring + the per-image lane-pad gap) -
    m2d = np.zeros((Hp, Wp), np.float32)
    m2d[ph:ph + H, pw:pw + W] = 1.0
    mimg = np.zeros((HWp,), np.float32)
    mimg[:HW] = m2d.reshape(-1)
    mask = jnp.asarray(np.tile(mimg, B)[None, :])              # (1, BHW)

    # ---- pack the input: pad 'same', flatten, pad channels/lanes/batch, ------
    # group B images per grid step along the lane axis, add a 128-lane halo.
    # TODO(synk): this wrapper-side padding does two extra HBM passes over x;
    #             an in-kernel halo build would remove them once NHW is large.
    x = x_nchw.astype(jnp.float32)
    xpad = jnp.pad(x, ((0, 0), (0, 0), (ph, ph), (pw, pw)))
    xf = jnp.pad(xpad.reshape(N, Cin, HW),
                 ((0, Npad - N), (0, CIN_PAD - Cin), (0, HWp - HW)))
    xg = xf.reshape(G, B, CIN_PAD, HWp).transpose(0, 2, 1, 3).reshape(G, CIN_PAD, BHW)
    xe = jnp.pad(xg, ((0, 0), (0, 0), (D0, D0)))               # (G, CIN_PAD, Lx)

    kernel = _make_object_cell_kernel(taps, CIN_PAD, Cout, BHW, D0, d0, Ly, K1, K2)

    out_flat = pl.pallas_call(
        kernel,
        out_shape=jax.ShapeDtypeStruct((G, Cout, BHW), jnp.float32),
        grid=(G,),
        in_specs=[
            pl.BlockSpec((None, CIN_PAD, Lx), lambda g: (g, 0, 0)),
            pl.BlockSpec((2 * Cout, K1), lambda g: (0, 0)),
            pl.BlockSpec((Cout, K2), lambda g: (0, 0)),
            pl.BlockSpec((Cout, 6), lambda g: (0, 0)),
            pl.BlockSpec((1, BHW), lambda g: (0, 0)),
        ],
        out_specs=pl.BlockSpec((None, Cout, BHW), lambda g: (g, 0, 0)),
        scratch_shapes=[
            pltpu.VMEM((max(K1, K2), BHW), jnp.float32),   # shared im2col buffer
            pltpu.VMEM((Cout, Ly), jnp.float32),           # conv2 input + zero halo
        ],
        compiler_params=pltpu.CompilerParams(
            dimension_semantics=("parallel",),
            # sized so B<=32 (~10 MiB/step) keeps full double-buffering on all
            # generations (v7x: 64 MiB physical / 32 MiB scoped default).
            vmem_limit_bytes=32 * 1024 * 1024),
    )(xe, w1big, w2big, pvec, mask)

    # ---- unpack: drop lane-pad gap, batch padding and the 'same' ring --------
    out = out_flat.reshape(G, Cout, B, HWp).transpose(0, 2, 1, 3)
    out = out.reshape(Npad, Cout, HWp)[:N, :, :HW].reshape(N, Cout, Hp, Wp)
    return out[:, :, ph:ph + H, pw:pw + W]


# --------------------------------------------------------------------------- #
# Pure-JAX reference (for sanity checking the kernel)
# --------------------------------------------------------------------------- #
def reference_forward(x_nchw, p, groups):
    dn = ('NCHW', 'OIHW', 'NCHW')
    prec = lax.Precision.HIGHEST
    y = lax.conv_general_dilated(x_nchw, p['w1'], (1, 1), 'SAME',
                                 feature_group_count=groups,
                                 dimension_numbers=dn, precision=prec)
    y = y + p['b1'].reshape(1, -1, 1, 1)
    y = jnp.where(y >= 0, y, p['a1'] * y)
    y = lax.conv_general_dilated(y, p['w2'], (1, 1), 'SAME',
                                 feature_group_count=groups,
                                 dimension_numbers=dn, precision=prec)
    y = y + p['b2'].reshape(1, -1, 1, 1)
    y = jnp.where(y >= 0, y, p['a2'] * y)
    scale = p['gamma'] / jnp.sqrt(p['rvar'] + 1e-5)
    shift = p['beta'] - p['rmean'] * scale
    y = y * scale.reshape(1, -1, 1, 1) + shift.reshape(1, -1, 1, 1)
    byp = lax.conv_general_dilated(x_nchw, p['wbp'], (1, 1), 'SAME',
                                   dimension_numbers=dn, precision=prec)
    byp = byp + p['bbp'].reshape(1, -1, 1, 1)
    return y + byp


# --------------------------------------------------------------------------- #
if __name__ == "__main__":
    IN_C, OUT_C = 4, 8          # out_channels divisible by groups = in_channels
    KH, KW = 3, 3
    N, H, W = 2, 16, 16
    GROUPS = IN_C

    keys = jax.random.split(jax.random.PRNGKey(0), 8)
    params = {
        'w1': jax.random.normal(keys[0], (OUT_C, IN_C // GROUPS, KH, KW),
                                jnp.float32) * np.sqrt(2.0 / (1 * KH * KW)),
        'b1': jax.random.normal(keys[1], (OUT_C,), jnp.float32) * 0.1,
        'w2': jax.random.normal(keys[2], (OUT_C, OUT_C // GROUPS, KH, KW),
                                jnp.float32) * np.sqrt(2.0 / ((OUT_C // GROUPS) * KH * KW)),
        'b2': jax.random.normal(keys[3], (OUT_C,), jnp.float32) * 0.1,
        'wbp': jax.random.normal(keys[4], (OUT_C, IN_C, 1, 1),
                                 jnp.float32) * np.sqrt(1.0 / IN_C),
        'bbp': jax.random.normal(keys[5], (OUT_C,), jnp.float32) * 0.1,
        'a1': jnp.float32(0.25),
        'a2': jnp.float32(0.25),
        'gamma': jnp.ones((OUT_C,), jnp.float32),
        'beta': jnp.zeros((OUT_C,), jnp.float32),
        'rmean': jnp.zeros((OUT_C,), jnp.float32),
        'rvar': jnp.ones((OUT_C,), jnp.float32),
    }

    # 1) small shape from the spec: batch=2 (auto batch_block -> B=1, 2 grid steps)
    x = jax.random.normal(keys[6], (N, IN_C, H, W), jnp.float32)
    out = jax.block_until_ready(object_cell_forward(x, params, GROUPS))
    ref = jax.block_until_ready(reference_forward(x, params, GROUPS))
    np.testing.assert_allclose(np.asarray(out), np.asarray(ref),
                               rtol=1e-4, atol=1e-4)

    # 2) exercise the batch-blocked path: 5 images, auto B=3, 2 grid steps,
    #    including one zero-padded image slot.
    x2 = jax.random.normal(keys[7], (5, IN_C, H, W), jnp.float32)
    out2 = jax.block_until_ready(object_cell_forward(x2, params, GROUPS))
    ref2 = jax.block_until_ready(reference_forward(x2, params, GROUPS))
    np.testing.assert_allclose(np.asarray(out2), np.asarray(ref2),
                               rtol=1e-4, atol=1e-4)

    print("KERNEL_OK")
</pallas_src>

<mosaic_0001>
module attributes {stable_mosaic.version = 11 : i64} {
  func.func @kernel(%arg0: i32, %arg1: memref<1x8x640xf32, #tpu.memory_space<vmem>>, %arg2: memref<16x72xf32, #tpu.memory_space<vmem>>, %arg3: memref<8x72xf32, #tpu.memory_space<vmem>>, %arg4: memref<8x6xf32, #tpu.memory_space<vmem>>, %arg5: memref<1x384xf32, #tpu.memory_space<vmem>>, %arg6: memref<1x8x384xf32, #tpu.memory_space<vmem>>, %arg7: memref<72x384xf32, #tpu.memory_space<vmem>>, %arg8: memref<8x640xf32, #tpu.memory_space<vmem>>) attributes {dimension_semantics = [#tpu.dimension_semantics<parallel>], iteration_bounds = array<i64: 2>, scalar_prefetch = 0 : i64, scratch_operands = 2 : i64, tpu.core_type = #tpu.core_type<tc>, window_params = [{transform_indices = @transform_0, window_bounds = array<i64: 1, 8, 640>}, {pipeline_mode = #tpu.pipeline_mode<synchronous>, transform_indices = @transform_1, window_bounds = array<i64: 16, 72>}, {pipeline_mode = #tpu.pipeline_mode<synchronous>, transform_indices = @transform_2, window_bounds = array<i64: 8, 72>}, {pipeline_mode = #tpu.pipeline_mode<synchronous>, transform_indices = @transform_3, window_bounds = array<i64: 8, 6>}, {pipeline_mode = #tpu.pipeline_mode<synchronous>, transform_indices = @transform_4, window_bounds = array<i64: 1, 384>}, {transform_indices = @transform_5, window_bounds = array<i64: 1, 8, 384>}]} {
    %c0 = arith.constant 0 : index
    %c0_0 = arith.constant 0 : index
    %0 = vector.load %arg4[%c0, %c0_0] : memref<8x6xf32, #tpu.memory_space<vmem>>, vector<8x1xf32>
    %c0_1 = arith.constant 0 : index
    %c1 = arith.constant 1 : index
    %1 = vector.load %arg4[%c0_1, %c1] : memref<8x6xf32, #tpu.memory_space<vmem>>, vector<8x1xf32>
    %c0_2 = arith.constant 0 : index
    %c2 = arith.constant 2 : index
    %2 = vector.load %arg4[%c0_2, %c2] : memref<8x6xf32, #tpu.memory_space<vmem>>, vector<8x1xf32>
    %c0_3 = arith.constant 0 : index
    %c3 = arith.constant 3 : index
    %3 = vector.load %arg4[%c0_3, %c3] : memref<8x6xf32, #tpu.memory_space<vmem>>, vector<8x1xf32>
    %c0_4 = arith.constant 0 : index
    %c4 = arith.constant 4 : index
    %4 = vector.load %arg4[%c0_4, %c4] : memref<8x6xf32, #tpu.memory_space<vmem>>, vector<8x1xf32>
    %c0_5 = arith.constant 0 : index
    %c5 = arith.constant 5 : index
    %5 = vector.load %arg4[%c0_5, %c5] : memref<8x6xf32, #tpu.memory_space<vmem>>, vector<8x1xf32>
    %c0_6 = arith.constant 0 : index
    %c0_7 = arith.constant 0 : index
    %c109 = arith.constant 109 : index
    %6 = vector.load %arg1[%c0_6, %c0_7, %c109] : memref<1x8x640xf32, #tpu.memory_space<vmem>>, vector<1x8x384xf32>
    %7 = vector.shape_cast %6 : vector<1x8x384xf32> to vector<8x384xf32>
    %c0_8 = arith.constant 0 : index
    %c0_9 = arith.constant 0 : index
    %8 = vector.load %arg7[%c0_8, %c0_9] : memref<72x384xf32, #tpu.memory_space<vmem>>, vector<8x384xf32>
    tpu.vector_store %arg7[%c0_8, %c0_9], %7 {strides = array<i32>} : memref<72x384xf32, #tpu.memory_space<vmem>>, vector<8x384xf32>,
    %c0_10 = arith.constant 0 : index
    %c0_11 = arith.constant 0 : index
    %c110 = arith.constant 110 : index
    %9 = vector.load %arg1[%c0_10, %c0_11, %c110] : memref<1x8x640xf32, #tpu.memory_space<vmem>>, vector<1x8x384xf32>
    %10 = vector.shape_cast %9 : vector<1x8x384xf32> to vector<8x384xf32>
    %c8 = arith.constant 8 : index
    %c0_12 = arith.constant 0 : index
    %11 = vector.load %arg7[%c8, %c0_12] : memref<72x384xf32, #tpu.memory_space<vmem>>, vector<8x384xf32>
    tpu.vector_store %arg7[%c8, %c0_12], %10 {strides = array<i32>} : memref<72x384xf32, #tpu.memory_space<vmem>>, vector<8x384xf32>,
    %c0_13 = arith.constant 0 : index
    %c0_14 = arith.constant 0 : index
    %c111 = arith.constant 111 : index
    %12 = vector.load %arg1[%c0_13, %c0_14, %c111] : memref<1x8x640xf32, #tpu.memory_space<vmem>>, vector<1x8x384xf32>
    %13 = vector.shape_cast %12 : vector<1x8x384xf32> to vector<8x384xf32>
    %c16 = arith.constant 16 : index
    %c0_15 = arith.constant 0 : index
    %14 = vector.load %arg7[%c16, %c0_15] : memref<72x384xf32, #tpu.memory_space<vmem>>, vector<8x384xf32>
    tpu.vector_store %arg7[%c16, %c0_15], %13 {strides = array<i32>} : memref<72x384xf32, #tpu.memory_space<vmem>>, vector<8x384xf32>,
    %c0_16 = arith.constant 0 : index
    %c0_17 = arith.constant 0 : index
    %c127 = arith.constant 127 : index
    %15 = vector.load %arg1[%c0_16, %c0_17, %c127] : memref<1x8x640xf32, #tpu.memory_space<vmem>>, vector<1x8x384xf32>
    %16 = vector.shape_cast %15 : vector<1x8x384xf32> to vector<8x384xf32>
    %c24 = arith.constant 24 : index
    %c0_18 = arith.constant 0 : index
    %17 = vector.load %arg7[%c24, %c0_18] : memref<72x384xf32, #tpu.memory_space<vmem>>, vector<8x384xf32>
    tpu.vector_store %arg7[%c24, %c0_18], %16 {strides = array<i32>} : memref<72x384xf32, #tpu.memory_space<vmem>>, vector<8x384xf32>,
    %c0_19 = arith.constant 0 : index
    %c0_20 = arith.constant 0 : index
    %c128 = arith.constant 128 : index
    %18 = vector.load %arg1[%c0_19, %c0_20, %c128] : memref<1x8x640xf32, #tpu.memory_space<vmem>>, vector<1x8x384xf32>
    %19 = vector.shape_cast %18 : vector<1x8x384xf32> to vector<8x384xf32>
    %c32 = arith.constant 32 : index
    %c0_21 = arith.constant 0 : index
    %20 = vector.load %arg7[%c32, %c0_21] : memref<72x384xf32, #tpu.memory_space<vmem>>, vector<8x384xf32>
    tpu.vector_store %arg7[%c32, %c0_21], %19 {strides = array<i32>} : memref<72x384xf32, #tpu.memory_space<vmem>>, vector<8x384xf32>,
    %c0_22 = arith.constant 0 : index
    %c0_23 = arith.constant 0 : index
    %c129 = arith.constant 129 : index
    %21 = vector.load %arg1[%c0_22, %c0_23, %c129] : memref<1x8x640xf32, #tpu.memory_space<vmem>>, vector<1x8x384xf32>
    %22 = vector.shape_cast %21 : vector<1x8x384xf32> to vector<8x384xf32>
    %c40 = arith.constant 40 : index
    %c0_24 = arith.constant 0 : index
    %23 = vector.load %arg7[%c40, %c0_24] : memref<72x384xf32, #tpu.memory_space<vmem>>, vector<8x384xf32>
    tpu.vector_store %arg7[%c40, %c0_24], %22 {strides = array<i32>} : memref<72x384xf32, #tpu.memory_space<vmem>>, vector<8x384xf32>,
    %c0_25 = arith.constant 0 : index
    %c0_26 = arith.constant 0 : index
    %c145 = arith.constant 145 : index
    %24 = vector.load %arg1[%c0_25, %c0_26, %c145] : memref<1x8x640xf32, #tpu.memory_space<vmem>>, vector<1x8x384xf32>
    %25 = vector.shape_cast %24 : vector<1x8x384xf32> to vector<8x384xf32>
    %c48 = arith.constant 48 : index
    %c0_27 = arith.constant 0 : index
    %26 = vector.load %arg7[%c48, %c0_27] : memref<72x384xf32, #tpu.memory_space<vmem>>, vector<8x384xf32>
    tpu.vector_store %arg7[%c48, %c0_27], %25 {strides = array<i32>} : memref<72x384xf32, #tpu.memory_space<vmem>>, vector<8x384xf32>,
    %c0_28 = arith.constant 0 : index
    %c0_29 = arith.constant 0 : index
    %c146 = arith.constant 146 : index
    %27 = vector.load %arg1[%c0_28, %c0_29, %c146] : memref<1x8x640xf32, #tpu.memory_space<vmem>>, vector<1x8x384xf32>
    %28 = vector.shape_cast %27 : vector<1x8x384xf32> to vector<8x384xf32>
    %c56 = arith.constant 56 : index
    %c0_30 = arith.constant 0 : index
    %29 = vector.load %arg7[%c56, %c0_30] : memref<72x384xf32, #tpu.memory_space<vmem>>, vector<8x384xf32>
    tpu.vector_store %arg7[%c56, %c0_30], %28 {strides = array<i32>} : memref<72x384xf32, #tpu.memory_space<vmem>>, vector<8x384xf32>,
    %c0_31 = arith.constant 0 : index
    %c0_32 = arith.constant 0 : index
    %c147 = arith.constant 147 : index
    %30 = vector.load %arg1[%c0_31, %c0_32, %c147] : memref<1x8x640xf32, #tpu.memory_space<vmem>>, vector<1x8x384xf32>
    %31 = vector.shape_cast %30 : vector<1x8x384xf32> to vector<8x384xf32>
    %c64 = arith.constant 64 : index
    %c0_33 = arith.constant 0 : index
    %32 = vector.load %arg7[%c64, %c0_33] : memref<72x384xf32, #tpu.memory_space<vmem>>, vector<8x384xf32>
    tpu.vector_store %arg7[%c64, %c0_33], %31 {strides = array<i32>} : memref<72x384xf32, #tpu.memory_space<vmem>>, vector<8x384xf32>,
    %c0_34 = arith.constant 0 : index
    %c0_35 = arith.constant 0 : index
    %33 = vector.load %arg2[%c0_34, %c0_35] : memref<16x72xf32, #tpu.memory_space<vmem>>, vector<16x72xf32>
    %c0_36 = arith.constant 0 : index
    %c0_37 = arith.constant 0 : index
    %34 = vector.load %arg7[%c0_36, %c0_37] : memref<72x384xf32, #tpu.memory_space<vmem>>, vector<72x384xf32>
    %cst = arith.constant dense<0.000000e+00> : vector<16x384xf32>
    %35 = tpu.matmul %33, %34, %cst {dimension_numbers = #tpu.dot_dimension_numbers<[1], [0], [0], [1], [0, 0, 1, 1], [], []>} : vector<16x72xf32>, vector<72x384xf32>, vector<16x384xf32> -> vector<16x384xf32>
    %36 = vector.extract_strided_slice %35 {offsets = [8, 0], sizes = [8, 384], strides = [1, 1]} : vector<16x384xf32> to vector<8x384xf32>
    %37 = vector.extract_strided_slice %35 {offsets = [0, 0], sizes = [8, 384], strides = [1, 1]} : vector<16x384xf32> to vector<8x384xf32>
    %38 = vector.broadcast %0 : vector<8x1xf32> to vector<8x384xf32>
    %39 = arith.addf %37, %38 : vector<8x384xf32>
    %cst_38 = arith.constant 0.000000e+00 : f32
    %40 = vector.broadcast %cst_38 : f32 to vector<8x384xf32>
    %41 = arith.cmpf oge, %39, %40 : vector<8x384xf32>
    %42 = vector.broadcast %1 : vector<8x1xf32> to vector<8x384xf32>
    %43 = arith.mulf %42, %39 : vector<8x384xf32>
    %44 = arith.select %41, %39, %43 : vector<8x384xi1>, vector<8x384xf32>
    %cst_39 = arith.constant 0.000000e+00 : f32
    %45 = vector.broadcast %cst_39 : f32 to vector<8x128xf32>
    %c0_40 = arith.constant 0 : index
    %c0_41 = arith.constant 0 : index
    %46 = vector.load %arg8[%c0_40, %c0_41] : memref<8x640xf32, #tpu.memory_space<vmem>>, vector<8x128xf32>
    tpu.vector_store %arg8[%c0_40, %c0_41], %45 {strides = array<i32>} : memref<8x640xf32, #tpu.memory_space<vmem>>, vector<8x128xf32>,
    %cst_42 = arith.constant 0.000000e+00 : f32
    %47 = vector.broadcast %cst_42 : f32 to vector<8x128xf32>
    %c0_43 = arith.constant 0 : index
    %c512 = arith.constant 512 : index
    %48 = vector.load %arg8[%c0_43, %c512] : memref<8x640xf32, #tpu.memory_space<vmem>>, vector<8x128xf32>
    tpu.vector_store %arg8[%c0_43, %c512], %47 {strides = array<i32>} : memref<8x640xf32, #tpu.memory_space<vmem>>, vector<8x128xf32>,
    %c0_44 = arith.constant 0 : index
    %c0_45 = arith.constant 0 : index
    %49 = vector.load %arg5[%c0_44, %c0_45] : memref<1x384xf32, #tpu.memory_space<vmem>>, vector<1x384xf32>
    %50 = vector.broadcast %49 : vector<1x384xf32> to vector<8x384xf32>
    %51 = arith.mulf %44, %50 : vector<8x384xf32>
    %c0_46 = arith.constant 0 : index
    %c128_47 = arith.constant 128 : index
    %52 = vector.load %arg8[%c0_46, %c128_47] : memref<8x640xf32, #tpu.memory_space<vmem>>, vector<8x384xf32>
    tpu.vector_store %arg8[%c0_46, %c128_47], %51 {strides = array<i32>} : memref<8x640xf32, #tpu.memory_space<vmem>>, vector<8x384xf32>,
    %c0_48 = arith.constant 0 : index
    %c109_49 = arith.constant 109 : index
    %53 = vector.load %arg8[%c0_48, %c109_49] : memref<8x640xf32, #tpu.memory_space<vmem>>, vector<8x384xf32>
    %c0_50 = arith.constant 0 : index
    %c0_51 = arith.constant 0 : index
    %54 = vector.load %arg7[%c0_50, %c0_51] : memref<72x384xf32, #tpu.memory_space<vmem>>, vector<8x384xf32>
    tpu.vector_store %arg7[%c0_50, %c0_51], %53 {strides = array<i32>} : memref<72x384xf32, #tpu.memory_space<vmem>>, vector<8x384xf32>,
    %c0_52 = arith.constant 0 : index
    %c110_53 = arith.constant 110 : index
    %55 = vector.load %arg8[%c0_52, %c110_53] : memref<8x640xf32, #tpu.memory_space<vmem>>, vector<8x384xf32>
    %c8_54 = arith.constant 8 : index
    %c0_55 = arith.constant 0 : index
    %56 = vector.load %arg7[%c8_54, %c0_55] : memref<72x384xf32, #tpu.memory_space<vmem>>, vector<8x384xf32>
    tpu.vector_store %arg7[%c8_54, %c0_55], %55 {strides = array<i32>} : memref<72x384xf32, #tpu.memory_space<vmem>>, vector<8x384xf32>,
    %c0_56 = arith.constant 0 : index
    %c111_57 = arith.constant 111 : index
    %57 = vector.load %arg8[%c0_56, %c111_57] : memref<8x640xf32, #tpu.memory_space<vmem>>, vector<8x384xf32>
    %c16_58 = arith.constant 16 : index
    %c0_59 = arith.constant 0 : index
    %58 = vector.load %arg7[%c16_58, %c0_59] : memref<72x384xf32, #tpu.memory_space<vmem>>, vector<8x384xf32>
    tpu.vector_store %arg7[%c16_58, %c0_59], %57 {strides = array<i32>} : memref<72x384xf32, #tpu.memory_space<vmem>>, vector<8x384xf32>,
    %c0_60 = arith.constant 0 : index
    %c127_61 = arith.constant 127 : index
    %59 = vector.load %arg8[%c0_60, %c127_61] : memref<8x640xf32, #tpu.memory_space<vmem>>, vector<8x384xf32>
    %c24_62 = arith.constant 24 : index
    %c0_63 = arith.constant 0 : index
    %60 = vector.load %arg7[%c24_62, %c0_63] : memref<72x384xf32, #tpu.memory_space<vmem>>, vector<8x384xf32>
    tpu.vector_store %arg7[%c24_62, %c0_63], %59 {strides = array<i32>} : memref<72x384xf32, #tpu.memory_space<vmem>>, vector<8x384xf32>,
    %c0_64 = arith.constant 0 : index
    %c128_65 = arith.constant 128 : index
    %61 = vector.load %arg8[%c0_64, %c128_65] : memref<8x640xf32, #tpu.memory_space<vmem>>, vector<8x384xf32>
    %c32_66 = arith.constant 32 : index
    %c0_67 = arith.constant 0 : index
    %62 = vector.load %arg7[%c32_66, %c0_67] : memref<72x384xf32, #tpu.memory_space<vmem>>, vector<8x384xf32>
    tpu.vector_store %arg7[%c32_66, %c0_67], %61 {strides = array<i32>} : memref<72x384xf32, #tpu.memory_space<vmem>>, vector<8x384xf32>,
    %c0_68 = arith.constant 0 : index
    %c129_69 = arith.constant 129 : index
    %63 = vector.load %arg8[%c0_68, %c129_69] : memref<8x640xf32, #tpu.memory_space<vmem>>, vector<8x384xf32>
    %c40_70 = arith.constant 40 : index
    %c0_71 = arith.constant 0 : index
    %64 = vector.load %arg7[%c40_70, %c0_71] : memref<72x384xf32, #tpu.memory_space<vmem>>, vector<8x384xf32>
    tpu.vector_store %arg7[%c40_70, %c0_71], %63 {strides = array<i32>} : memref<72x384xf32, #tpu.memory_space<vmem>>, vector<8x384xf32>,
    %c0_72 = arith.constant 0 : index
    %c145_73 = arith.constant 145 : index
    %65 = vector.load %arg8[%c0_72, %c145_73] : memref<8x640xf32, #tpu.memory_space<vmem>>, vector<8x384xf32>
    %c48_74 = arith.constant 48 : index
    %c0_75 = arith.constant 0 : index
    %66 = vector.load %arg7[%c48_74, %c0_75] : memref<72x384xf32, #tpu.memory_space<vmem>>, vector<8x384xf32>
    tpu.vector_store %arg7[%c48_74, %c0_75], %65 {strides = array<i32>} : memref<72x384xf32, #tpu.memory_space<vmem>>, vector<8x384xf32>,
    %c0_76 = arith.constant 0 : index
    %c146_77 = arith.constant 146 : index
    %67 = vector.load %arg8[%c0_76, %c146_77] : memref<8x640xf32, #tpu.memory_space<vmem>>, vector<8x384xf32>
    %c56_78 = arith.constant 56 : index
    %c0_79 = arith.constant 0 : index
    %68 = vector.load %arg7[%c56_78, %c0_79] : memref<72x384xf32, #tpu.memory_space<vmem>>, vector<8x384xf32>
    tpu.vector_store %arg7[%c56_78, %c0_79], %67 {strides = array<i32>} : memref<72x384xf32, #tpu.memory_space<vmem>>, vector<8x384xf32>,
    %c0_80 = arith.constant 0 : index
    %c147_81 = arith.constant 147 : index
    %69 = vector.load %arg8[%c0_80, %c147_81] : memref<8x640xf32, #tpu.memory_space<vmem>>, vector<8x384xf32>
    %c64_82 = arith.constant 64 : index
    %c0_83 = arith.constant 0 : index
    %70 = vector.load %arg7[%c64_82, %c0_83] : memref<72x384xf32, #tpu.memory_space<vmem>>, vector<8x384xf32>
    tpu.vector_store %arg7[%c64_82, %c0_83], %69 {strides = array<i32>} : memref<72x384xf32, #tpu.memory_space<vmem>>, vector<8x384xf32>,
    %c0_84 = arith.constant 0 : index
    %c0_85 = arith.constant 0 : index
    %71 = vector.load %arg3[%c0_84, %c0_85] : memref<8x72xf32, #tpu.memory_space<vmem>>, vector<8x72xf32>
    %c0_86 = arith.constant 0 : index
    %c0_87 = arith.constant 0 : index
    %72 = vector.load %arg7[%c0_86, %c0_87] : memref<72x384xf32, #tpu.memory_space<vmem>>, vector<72x384xf32>
    %cst_88 = arith.constant dense<0.000000e+00> : vector<8x384xf32>
    %73 = tpu.matmul %71, %72, %cst_88 {dimension_numbers = #tpu.dot_dimension_numbers<[1], [0], [0], [1], [0, 0, 1, 1], [], []>} : vector<8x72xf32>, vector<72x384xf32>, vector<8x384xf32> -> vector<8x384xf32>
    %74 = vector.broadcast %2 : vector<8x1xf32> to vector<8x384xf32>
    %75 = arith.addf %73, %74 : vector<8x384xf32>
    %cst_89 = arith.constant 0.000000e+00 : f32
    %76 = vector.broadcast %cst_89 : f32 to vector<8x384xf32>
    %77 = arith.cmpf oge, %75, %76 : vector<8x384xf32>
    %78 = vector.broadcast %3 : vector<8x1xf32> to vector<8x384xf32>
    %79 = arith.mulf %78, %75 : vector<8x384xf32>
    %80 = arith.select %77, %75, %79 : vector<8x384xi1>, vector<8x384xf32>
    %81 = vector.broadcast %4 : vector<8x1xf32> to vector<8x384xf32>
    %82 = arith.mulf %80, %81 : vector<8x384xf32>
    %83 = arith.addf %82, %36 : vector<8x384xf32>
    %84 = vector.broadcast %5 : vector<8x1xf32> to vector<8x384xf32>
    %85 = arith.addf %83, %84 : vector<8x384xf32>
    %c0_90 = arith.constant 0 : index
    %c0_91 = arith.constant 0 : index
    %c0_92 = arith.constant 0 : index
    %86 = vector.load %arg6[%c0_90, %c0_91, %c0_92] : memref<1x8x384xf32, #tpu.memory_space<vmem>>, vector<1x8x384xf32>
    %87 = vector.shape_cast %86 : vector<1x8x384xf32> to vector<8x384xf32>
    %88 = vector.shape_cast %85 : vector<8x384xf32> to vector<1x8x384xf32>
    tpu.vector_store %arg6[%c0_90, %c0_91, %c0_92], %88 {strides = array<i32>} : memref<1x8x384xf32, #tpu.memory_space<vmem>>, vector<1x8x384xf32>,
    return
  }
  func.func @transform_0(%arg0: i32) -> (i32, i32, i32) {
    %c0_i32 = arith.constant 0 : i32
    %c0_i32_0 = arith.constant 0 : i32
    %c0_i32_1 = arith.constant 0 : i32
    return %arg0, %c0_i32, %c0_i32_0 : i32, i32, i32
  }
  func.func @transform_1(%arg0: i32) -> (i32, i32) {
    %c0_i32 = arith.constant 0 : i32
    %c0_i32_0 = arith.constant 0 : i32
    %c0_i32_1 = arith.constant 0 : i32
    return %c0_i32, %c0_i32_0 : i32, i32
  }
  func.func @transform_2(%arg0: i32) -> (i32, i32) {
    %c0_i32 = arith.constant 0 : i32
    %c0_i32_0 = arith.constant 0 : i32
    %c0_i32_1 = arith.constant 0 : i32
    return %c0_i32, %c0_i32_0 : i32, i32
  }
  func.func @transform_3(%arg0: i32) -> (i32, i32) {
    %c0_i32 = arith.constant 0 : i32
    %c0_i32_0 = arith.constant 0 : i32
    %c0_i32_1 = arith.constant 0 : i32
    return %c0_i32, %c0_i32_0 : i32, i32
  }
  func.func @transform_4(%arg0: i32) -> (i32, i32) {
    %c0_i32 = arith.constant 0 : i32
    %c0_i32_0 = arith.constant 0 : i32
    %c0_i32_1 = arith.constant 0 : i32
    return %c0_i32, %c0_i32_0 : i32, i32
  }
  func.func @transform_5(%arg0: i32) -> (i32, i32, i32) {
    %c0_i32 = arith.constant 0 : i32
    %c0_i32_0 = arith.constant 0 : i32
    %c0_i32_1 = arith.constant 0 : i32
    return %arg0, %c0_i32, %c0_i32_0 : i32, i32, i32
  }
}

</mosaic_0001>

<llo_original>
// kernel: tpu_custom_call.1
$region0: #{tpu_custom_call.1}
  #allocation0 [shape = 'u32[]', space=smem, size = 0x4, offset = 0x4, fixed_abs, tag = 'smem constant byte address 0x4 - core index']
  #allocation1 [shape = 'u32[144,128]{1,0:T(1,128)}', space=vmem, size = 0x12000, scoped, tag = 'internal scratch']
  #allocation2 [shape = 'f32[72,384]{1,0:T(8,128)}', space=vmem, size = 0x1b000, scoped, tag = 'scratch operand']
  #allocation3 [shape = 'f32[8,640]{1,0:T(8,128)}', space=vmem, size = 0x5000, scoped, tag = 'scratch operand']
  %s0 = inlined_call_operand.hbm [shape: f32[2,8,640], index: 0, kind: input, shape index: {}]
  %s1 = inlined_call_operand.hbm [shape: f32[16,72], index: 1, kind: input, shape index: {}]
  %s2 = inlined_call_operand.hbm [shape: f32[8,72], index: 2, kind: input, shape index: {}]
  %s3 = inlined_call_operand.hbm [shape: f32[8,6], index: 3, kind: input, shape index: {}]
  %s4 = inlined_call_operand.vmem [shape: f32[1,384], index: 4, kind: input, shape index: {}]
  %s5 = inlined_call_operand.hbm [shape: f32[2,8,384], index: 5, kind: output, shape index: {}]
  %s6 = sld [smem:[#allocation0]]
  $region69: #{tpu_custom_call.1} parent=0
    _
  %s8 = ssub.s32 1, %s6
  %s9 = scalar_select 0, %s8, %s6
  $region1: #{tpu_custom_call.1} parent=0
    #allocation4 [shape = 'u8[40960]{0}', space=vmem, size = 0xa000, scoped, tag = 'input window, operand 0']
    #allocation5 [shape = 's32[2]{0}', space=sflag, size = 0x8, scoped, tag = 'scoped memory for tpu_custom_call.1']
    #allocation6 [shape = 's32[2]{0}', space=sflag, size = 0x8, scoped, tag = 'scoped memory for tpu_custom_call.1']
    #allocation7 [shape = 'u8[8192]{0}', space=vmem, size = 0x2000, scoped, tag = 'input window, operand 1, single buffered']
    #allocation8 [shape = 's32[1]{0}', space=sflag, size = 0x4, scoped, tag = 'scoped memory for tpu_custom_call.1']
    #allocation9 [shape = 'u8[4096]{0}', space=vmem, size = 0x1000, scoped, tag = 'input window, operand 2, single buffered']
    #allocation10 [shape = 'u8[4096]{0}', space=vmem, size = 0x1000, scoped, tag = 'input window, operand 3, single buffered']
    #allocation11 [shape = 's32[1]{0}', space=sflag, size = 0x4, scoped, tag = 'scoped memory for tpu_custom_call.1']
    #allocation12 [shape = 'u8[24576]{0}', space=vmem, size = 0x6000, scoped, tag = 'output window, operand 0']
    %10 = vsyncpa [#allocation5], 0
    %s11 = scalar_lea.sflag [#allocation5], 1
    %12 = vsyncpa %s11, 0
    %13 = vsyncpa [#allocation8], 0
    %14 = vsyncpa [#allocation11], 0
    %15 = vsyncpa [#allocation6], 0
    %s16 = scalar_lea.sflag [#allocation6], 1
    %17 = vsyncpa %s16, 0
    loop: start=0, step=1, limit=4
    $region2: #{tpu_custom_call.1} parent=1 // loop_pre_header
      _
    $region3: #{tpu_custom_call.1} parent=1 // loop_header
      %s19 = sphi 0, %s23
      %p20 = scmp.ge.s32.totalorder %s19, 4
      %s29 = sphi 0, %s31
      %s32 = sphi 0, %s29
      %s33 = sphi 0, %s32
      %s49 = sphi 0, %s33
      %s53 = sphi 0, %s53
      %s55 = sphi 0, %s53
      %s56 = sphi 0, %s55
      %s70 = sphi 0, %s56
      %s74 = sphi 0, %s74
      %s76 = sphi 0, %s74
      %s77 = sphi 0, %s76
      %s91 = sphi 0, %s77
      %s95 = sphi 0, %s95
      %s97 = sphi 0, %s95
      %s98 = sphi 0, %s97
      %s112 = sphi 0, %s98
      %s116 = sphi 0, %s116
      %s118 = sphi 0, %s116
      %s119 = sphi 0, %s118
      %s133 = sphi 0, %s119
      %s139 = sphi 0, %s141
      %s142 = sphi 0, %s139
      %s143 = sphi 0, %s142
      %s159 = sphi 0, %s143
    $region4: #{tpu_custom_call.1} parent=1 // loop_header_branch
      %22 = sbr.rel (%p20) target = $region8
    $region5: #{tpu_custom_call.1} parent=1 // loop_body
      %s24 = ssub.s32 %s19, 1
      %s25 = ssub.s32 %s19, 2
      %s26 = sadd.s32 %s19, 1
      %s27 = ssub.s32 %s19, %s26
      %p28 = scmp.eq.s32.totalorder %s27, 0
      %s30 = sadd.s32 %s29, 1
      %s31 = scalar_select %p28, %s29, %s30
      %p34 = pneg %p28
      %p35 = scmp.eq.s32.totalorder %s19, 1
      %p36 = por %p34, %p35
      %p37 = scmp.ne.s32.totalorder %s29, %s32
      %p38 = scmp.eq.s32.totalorder %s19, 0
      %p39 = por %p37, %p38
      %p40 = scmp.ne.s32.totalorder %s29, %s32
      %p41 = scmp.eq.s32.totalorder %s24, 1
      %p42 = por %p40, %p41
      %p43 = scmp.ne.s32.totalorder %s32, %s33
      %p44 = scmp.eq.s32.totalorder %s24, 0
      %p45 = por %p43, %p44
      %p46 = scmp.ne.s32.totalorder %s32, %s33
      %p47 = scmp.eq.s32.totalorder %s25, 1
      %p48 = por %p46, %p47
      %p50 = scmp.ne.s32.totalorder %s33, %s49
      %p51 = scmp.eq.s32.totalorder %s25, 0
      %p52 = por %p50, %p51
      %s54 = sadd.s32 %s53, 1
      %p57 = scmp.eq.s32.totalorder %s19, 1
      %p58 = scmp.ne.s32.totalorder %s53, %s55
      %p59 = scmp.eq.s32.totalorder %s19, 0
      %p60 = por %p58, %p59
      %p61 = scmp.ne.s32.totalorder %s53, %s55
      %p62 = scmp.eq.s32.totalorder %s24, 1
      %p63 = por %p61, %p62
      %p64 = scmp.ne.s32.totalorder %s55, %s56
      %p65 = scmp.eq.s32.totalorder %s24, 0
      %p66 = por %p64, %p65
      %p67 = scmp.ne.s32.totalorder %s55, %s56
      %p68 = scmp.eq.s32.totalorder %s25, 1
      %p69 = por %p67, %p68
      %p71 = scmp.ne.s32.totalorder %s56, %s70
      %p72 = scmp.eq.s32.totalorder %s25, 0
      %p73 = por %p71, %p72
      %s75 = sadd.s32 %s74, 1
      %p78 = scmp.eq.s32.totalorder %s19, 1
      %p79 = scmp.ne.s32.totalorder %s74, %s76
      %p80 = scmp.eq.s32.totalorder %s19, 0
      %p81 = por %p79, %p80
      %p82 = scmp.ne.s32.totalorder %s74, %s76
      %p83 = scmp.eq.s32.totalorder %s24, 1
      %p84 = por %p82, %p83
      %p85 = scmp.ne.s32.totalorder %s76, %s77
      %p86 = scmp.eq.s32.totalorder %s24, 0
      %p87 = por %p85, %p86
      %p88 = scmp.ne.s32.totalorder %s76, %s77
      %p89 = scmp.eq.s32.totalorder %s25, 1
      %p90 = por %p88, %p89
      %p92 = scmp.ne.s32.totalorder %s77, %s91
      %p93 = scmp.eq.s32.totalorder %s25, 0
      %p94 = por %p92, %p93
      %s96 = sadd.s32 %s95, 1
      %p99 = scmp.eq.s32.totalorder %s19, 1
      %p100 = scmp.ne.s32.totalorder %s95, %s97
      %p101 = scmp.eq.s32.totalorder %s19, 0
      %p102 = por %p100, %p101
      %p103 = scmp.ne.s32.totalorder %s95, %s97
      %p104 = scmp.eq.s32.totalorder %s24, 1
      %p105 = por %p103, %p104
      %p106 = scmp.ne.s32.totalorder %s97, %s98
      %p107 = scmp.eq.s32.totalorder %s24, 0
      %p108 = por %p106, %p107
      %p109 = scmp.ne.s32.totalorder %s97, %s98
      %p110 = scmp.eq.s32.totalorder %s25, 1
      %p111 = por %p109, %p110
      %p113 = scmp.ne.s32.totalorder %s98, %s112
      %p114 = scmp.eq.s32.totalorder %s25, 0
      %p115 = por %p113, %p114
      %s117 = sadd.s32 %s116, 1
      %p120 = scmp.eq.s32.totalorder %s19, 1
      %p121 = scmp.ne.s32.totalorder %s116, %s118
      %p122 = scmp.eq.s32.totalorder %s19, 0
      %p123 = por %p121, %p122
      %p124 = scmp.ne.s32.totalorder %s116, %s118
      %p125 = scmp.eq.s32.totalorder %s24, 1
      %p126 = por %p124, %p125
      %p127 = scmp.ne.s32.totalorder %s118, %s119
      %p128 = scmp.eq.s32.totalorder %s24, 0
      %p129 = por %p127, %p128
      %p130 = scmp.ne.s32.totalorder %s118, %s119
      %p131 = scmp.eq.s32.totalorder %s25, 1
      %p132 = por %p130, %p131
      %p134 = scmp.ne.s32.totalorder %s119, %s133
      %p135 = scmp.eq.s32.totalorder %s25, 0
      %p136 = por %p134, %p135
      %s137 = ssub.s32 %s19, %s26
      %p138 = scmp.eq.s32.totalorder %s137, 0
      %s140 = sadd.s32 %s139, 1
      %s141 = scalar_select %p138, %s139, %s140
      %p144 = pneg %p138
      %p145 = scmp.eq.s32.totalorder %s19, 1
      %p146 = por %p144, %p145
      %p147 = scmp.ne.s32.totalorder %s139, %s142
      %p148 = scmp.eq.s32.totalorder %s19, 0
      %p149 = por %p147, %p148
      %p150 = scmp.ne.s32.totalorder %s139, %s142
      %p151 = scmp.eq.s32.totalorder %s24, 1
      %p152 = por %p150, %p151
      %p153 = scmp.ne.s32.totalorder %s142, %s143
      %p154 = scmp.eq.s32.totalorder %s24, 0
      %p155 = por %p153, %p154
      %p156 = scmp.ne.s32.totalorder %s142, %s143
      %p157 = scmp.eq.s32.totalorder %s25, 1
      %p158 = por %p156, %p157
      %p160 = scmp.ne.s32.totalorder %s143, %s159
      %p161 = scmp.eq.s32.totalorder %s25, 0
      %p162 = por %p160, %p161
      %p163 = scmp.le.s32.totalorder 1, %s19
      %p164 = scmp.lt.s32.totalorder %s19, 3
      %p165 = pnand %p163, %p164
      %p166 = pneg %p165
      // Predicated region
      $region9: #{tpu_custom_call.1} parent=5 // pred_check
        _
      $region10: #{tpu_custom_call.1} parent=5 // pred_check_branch
        %168 = sbr.rel (%p165) target = $region12
      $region11: #{tpu_custom_call.1} parent=5 // pred_region
        %s169 = ssub.s32 %s19, 1
        // Predicated region
        $region13: #{tpu_custom_call.1} parent=11 // pred_check
          %p170 = pneg %p66
        $region14: #{tpu_custom_call.1} parent=11 // pred_check_branch
          %172 = sbr.rel (%p170) target = $region16
        $region15: #{tpu_custom_call.1} parent=11 // pred_region
          %s174 = ssub.s32 256, 256
          %175 = vsyncadd [#allocation8], %s174
          %s176 = sshll.u32 [#allocation7], 4
          %s177 = int_to_ptr.vmem [resolvable:$true] %s176
          %182 = dma.hbm_to_vmem [thread:$0]  %s1, 256, %s177, [#allocation8], 128, 128, 8
        $region16: #{tpu_custom_call.1} parent=11 // pred_fallthru
          _
        // Predicated region
        $region17: #{tpu_custom_call.1} parent=11 // pred_check
          %p183 = pneg %p87
        $region18: #{tpu_custom_call.1} parent=11 // pred_check_branch
          %185 = sbr.rel (%p183) target = $region20
        $region19: #{tpu_custom_call.1} parent=11 // pred_region
          %s187 = ssub.s32 128, 128
          %188 = vsyncadd [#allocation8], %s187
          %s190 = sshll.u32 [#allocation9], 4
          %s191 = int_to_ptr.vmem [resolvable:$true] %s190
          %193 = dma.hbm_to_vmem [thread:$0]  %s2, 128, %s191, [#allocation8]
        $region20: #{tpu_custom_call.1} parent=11 // pred_fallthru
          _
        // Predicated region
        $region21: #{tpu_custom_call.1} parent=11 // pred_check
          %p194 = pneg %p108
        $region22: #{tpu_custom_call.1} parent=11 // pred_check_branch
          %196 = sbr.rel (%p194) target = $region24
        $region23: #{tpu_custom_call.1} parent=11 // pred_region
          %s198 = ssub.s32 128, 128
          %199 = vsyncadd [#allocation11], %s198
          %s201 = sshll.u32 [#allocation10], 4
          %s202 = int_to_ptr.vmem [resolvable:$true] %s201
          %204 = dma.hbm_to_vmem [thread:$0]  %s3, 128, %s202, [#allocation11]
        $region24: #{tpu_custom_call.1} parent=11 // pred_fallthru
          _
        // Predicated region
        $region25: #{tpu_custom_call.1} parent=11 // pred_check
          %p205 = pneg %p129
        $region26: #{tpu_custom_call.1} parent=11 // pred_check_branch
          %207 = sbr.rel (%p205) target = $region28
        $region27: #{tpu_custom_call.1} parent=11 // pred_region
          _
        $region28: #{tpu_custom_call.1} parent=11 // pred_fallthru
          _
      $region12: #{tpu_custom_call.1} parent=5 // pred_fallthru
        _
      %p208 = scmp.lt.s32.totalorder %s19, 2
      // Predicated region
      $region29: #{tpu_custom_call.1} parent=5 // pred_check
        %p209 = pneg %p208
      $region30: #{tpu_custom_call.1} parent=5 // pred_check_branch
        %211 = sbr.rel (%p209) target = $region32
      $region31: #{tpu_custom_call.1} parent=5 // pred_region
        // Predicated region
        $region33: #{tpu_custom_call.1} parent=31 // pred_check
          %p212 = pneg %p39
        $region34: #{tpu_custom_call.1} parent=31 // pred_check_branch
          %214 = sbr.rel (%p212) target = $region36
        $region35: #{tpu_custom_call.1} parent=31 // pred_region
          %s215 = sand.u32 %s29, 1
          %s216 = scalar_lea.sflag [#allocation5], %s215
          %s217 = sand.u32 %s29, 1
          %s218 = smul.addr %s217, 40
          %s219 = scalar_lea.vmem [#allocation4], %s218
          %s221 = ssub.s32 640, 640
          %222 = vsyncadd %s216, %s221
          %s223 = smul.addr %s19, 5
          %s224 = smul.addr %s223, 128
          %s225 = scalar_lea.hbm %s0, %s224
          %s227 = sshll.u32 %s219, 4
          %s228 = int_to_ptr.vmem [resolvable:$true] %s227
          %230 = dma.hbm_to_vmem [thread:$0]  %s225, 640, %s228, %s216
        $region36: #{tpu_custom_call.1} parent=31 // pred_fallthru
          _
      $region32: #{tpu_custom_call.1} parent=5 // pred_fallthru
        _
      %p231 = scmp.le.s32.totalorder 1, %s19
      %p232 = scmp.lt.s32.totalorder %s19, 3
      %p233 = pnand %p231, %p232
      %p234 = pneg %p233
      // Predicated region
      $region37: #{tpu_custom_call.1} parent=5 // pred_check
        _
      $region38: #{tpu_custom_call.1} parent=5 // pred_check_branch
        %236 = sbr.rel (%p233) target = $region40
      $region39: #{tpu_custom_call.1} parent=5 // pred_region
        %s237 = ssub.s32 %s19, 1
        %s238 = sand.u32 %s32, 1
        %s239 = scalar_lea.sflag [#allocation5], %s238
        %s240 = sand.u32 %s32, 1
        %s241 = smul.addr %s240, 40
        %s242 = scalar_lea.vmem [#allocation4], %s241
        // Predicated region
        $region41: #{tpu_custom_call.1} parent=39 // pred_check
          %p243 = pneg %p45
        $region42: #{tpu_custom_call.1} parent=39 // pred_check_branch
          %245 = sbr.rel (%p243) target = $region44
        $region43: #{tpu_custom_call.1} parent=39 // pred_region
          %246 = dma.done %s239, 640
        $region44: #{tpu_custom_call.1} parent=39 // pred_fallthru
          _
        // Predicated region
        $region45: #{tpu_custom_call.1} parent=39 // pred_check
          %p247 = pneg %p66
        $region46: #{tpu_custom_call.1} parent=39 // pred_check_branch
          %249 = sbr.rel (%p247) target = $region48
        $region47: #{tpu_custom_call.1} parent=39 // pred_region
          %250 = dma.done [#allocation8], 256
        $region48: #{tpu_custom_call.1} parent=39 // pred_fallthru
          _
        // Predicated region
        $region49: #{tpu_custom_call.1} parent=39 // pred_check
          %p251 = pneg %p87
        $region50: #{tpu_custom_call.1} parent=39 // pred_check_branch
          %253 = sbr.rel (%p251) target = $region52
        $region51: #{tpu_custom_call.1} parent=39 // pred_region
          %254 = dma.done [#allocation8], 128
        $region52: #{tpu_custom_call.1} parent=39 // pred_fallthru
          _
        // Predicated region
        $region53: #{tpu_custom_call.1} parent=39 // pred_check
          %p255 = pneg %p108
        $region54: #{tpu_custom_call.1} parent=39 // pred_check_branch
          %257 = sbr.rel (%p255) target = $region56
        $region55: #{tpu_custom_call.1} parent=39 // pred_region
          %258 = dma.done [#allocation11], 128
        $region56: #{tpu_custom_call.1} parent=39 // pred_fallthru
          _
        %s259 = sand.u32 %s32, 1
        %s260 = scalar_lea.sflag [#allocation5], %s259
        %s261 = sand.u32 %s32, 1
        %s262 = smul.addr %s261, 40
        %s263 = scalar_lea.vmem [#allocation4], %s262
        %p264 = pneg %p45
        %p265 = pneg %p42
        %p266 = pneg %p66
        %p267 = pneg %p63
        %p268 = pneg %p87
        %p269 = pneg %p84
        %p270 = pneg %p108
        %p271 = pneg %p105
        %p272 = pneg %p129
        %p273 = pneg %p126
        %p274 = pneg %p155
        %p275 = pneg %p152
        %s276 = sand.u32 %s142, 1
        %s277 = scalar_lea.sflag [#allocation6], %s276
        %s278 = sand.u32 %s142, 1
        %s279 = smul.addr %s278, 24
        %s280 = scalar_lea.vmem [#allocation12], %s279
        %v281 = vld [vmem:[#allocation10] sm:$0xff]
        %v282 = vld [vmem:[%s242] sm:$0xff]
        %v283 = vld [vmem:[%s242 + $0x8] sm:$0xff]
        %v284 = vld [vmem:[%s242 + $0x10] sm:$0xff]
        %v285 = vld [vmem:[%s242 + $0x18] sm:$0xff]
        %290 = vrot.lane.b32.xlu0 %v282, 19
        %v291 = vpop.permute.xlu0 %290
        %292 = vrot.lane.b32.xlu0 %v283, 19
        %v293 = vpop.permute.xlu0 %292
        %294 = vrot.lane.b32.xlu0 %v284, 19
        %v295 = vpop.permute.xlu0 %294
        %296 = vrot.lane.b32.xlu0 %v285, 19
        %v297 = vpop.permute.xlu0 %296
        %vm298 = vcmask 154624
        %v299 = vsel %vm298, %v291, %v293
        %v300 = vsel %vm298, %v293, %v295
        %v301 = vsel %vm298, %v295, %v297
        %305 = vst [vmem:[#allocation2] sm:$0xff] %v299
        %306 = vst [vmem:[#allocation2 + $0x8] sm:$0xff] %v300
        %307 = vst [vmem:[#allocation2 + $0x10] sm:$0xff] %v301
        %v308 = vld [vmem:[%s242] sm:$0xff]
        %v309 = vld [vmem:[%s242 + $0x8] sm:$0xff]
        %v310 = vld [vmem:[%s242 + $0x10] sm:$0xff]
        %v311 = vld [vmem:[%s242 + $0x18] sm:$0xff]
        %316 = vrot.lane.b32.xlu0 %v308, 18
        %v317 = vpop.permute.xlu0 %316
        %318 = vrot.lane.b32.xlu0 %v309, 18
        %v319 = vpop.permute.xlu0 %318
        %320 = vrot.lane.b32.xlu0 %v310, 18
        %v321 = vpop.permute.xlu0 %320
        %322 = vrot.lane.b32.xlu0 %v311, 18
        %v323 = vpop.permute.xlu0 %322
        %vm324 = vcmask 146432
        %v325 = vsel %vm324, %v317, %v319
        %v326 = vsel %vm324, %v319, %v321
        %v327 = vsel %vm324, %v321, %v323
        %331 = vst [vmem:[#allocation2 + $0x18] sm:$0xff] %v325
        %332 = vst [vmem:[#allocation2 + $0x20] sm:$0xff] %v326
        %333 = vst [vmem:[#allocation2 + $0x28] sm:$0xff] %v327
        %v334 = vld [vmem:[%s242] sm:$0xff]
        %v335 = vld [vmem:[%s242 + $0x8] sm:$0xff]
        %v336 = vld [vmem:[%s242 + $0x10] sm:$0xff]
        %v337 = vld [vmem:[%s242 + $0x18] sm:$0xff]
        %342 = vrot.lane.b32.xlu0 %v334, 17
        %v343 = vpop.permute.xlu0 %342
        %344 = vrot.lane.b32.xlu0 %v335, 17
        %v345 = vpop.permute.xlu0 %344
        %346 = vrot.lane.b32.xlu0 %v336, 17
        %v347 = vpop.permute.xlu0 %346
        %348 = vrot.lane.b32.xlu0 %v337, 17
        %v349 = vpop.permute.xlu0 %348
        %vm350 = vcmask 138240
        %v351 = vsel %vm350, %v343, %v345
        %v352 = vsel %vm350, %v345, %v347
        %v353 = vsel %vm350, %v347, %v349
        %357 = vst [vmem:[#allocation2 + $0x30] sm:$0xff] %v351
        %358 = vst [vmem:[#allocation2 + $0x38] sm:$0xff] %v352
        %359 = vst [vmem:[#allocation2 + $0x40] sm:$0xff] %v353
        %v360 = vld [vmem:[%s242] sm:$0xff]
        %v361 = vld [vmem:[%s242 + $0x8] sm:$0xff]
        %v362 = vld [vmem:[%s242 + $0x10] sm:$0xff]
        %v363 = vld [vmem:[%s242 + $0x18] sm:$0xff]
        %368 = vrot.lane.b32.xlu0 %v360, 1
        %v369 = vpop.permute.xlu0 %368
        %370 = vrot.lane.b32.xlu0 %v361, 1
        %v371 = vpop.permute.xlu0 %370
        %372 = vrot.lane.b32.xlu0 %v362, 1
        %v373 = vpop.permute.xlu0 %372
        %374 = vrot.lane.b32.xlu0 %v363, 1
        %v375 = vpop.permute.xlu0 %374
        %vm376 = vcmask 7168
        %v377 = vsel %vm376, %v369, %v371
        %v378 = vsel %vm376, %v371, %v373
        %v379 = vsel %vm376, %v373, %v375
        %383 = vst [vmem:[#allocation2 + $0x48] sm:$0xff] %v377
        %384 = vst [vmem:[#allocation2 + $0x50] sm:$0xff] %v378
        %385 = vst [vmem:[#allocation2 + $0x58] sm:$0xff] %v379
        %v386 = vld [vmem:[%s242 + $0x8] sm:$0xff]
        %v387 = vld [vmem:[%s242 + $0x10] sm:$0xff]
        %v388 = vld [vmem:[%s242 + $0x18] sm:$0xff]
        %389 = vst [vmem:[#allocation2 + $0x60] sm:$0xff] %v386
        %390 = vst [vmem:[#allocation2 + $0x68] sm:$0xff] %v387
        %391 = vst [vmem:[#allocation2 + $0x70] sm:$0xff] %v388
        %v392 = vld [vmem:[%s242 + $0x8] sm:$0xff]
        %v393 = vld [vmem:[%s242 + $0x10] sm:$0xff]
        %v394 = vld [vmem:[%s242 + $0x18] sm:$0xff]
        %v395 = vld [vmem:[%s242 + $0x20] sm:$0xff]
        %400 = vrot.lane.b32.xlu0 %v392, 127
        %v401 = vpop.permute.xlu0 %400
        %402 = vrot.lane.b32.xlu0 %v393, 127
        %v403 = vpop.permute.xlu0 %402
        %404 = vrot.lane.b32.xlu0 %v394, 127
        %v405 = vpop.permute.xlu0 %404
        %406 = vrot.lane.b32.xlu0 %v395, 127
        %v407 = vpop.permute.xlu0 %406
        %vm408 = vcmask 1039360
        %v409 = vsel %vm408, %v401, %v403
        %v410 = vsel %vm408, %v403, %v405
        %v411 = vsel %vm408, %v405, %v407
        %415 = vst [vmem:[#allocation2 + $0x78] sm:$0xff] %v409
        %416 = vst [vmem:[#allocation2 + $0x80] sm:$0xff] %v410
        %417 = vst [vmem:[#allocation2 + $0x88] sm:$0xff] %v411
        %v418 = vld [vmem:[%s242 + $0x8] sm:$0xff]
        %v419 = vld [vmem:[%s242 + $0x10] sm:$0xff]
        %v420 = vld [vmem:[%s242 + $0x18] sm:$0xff]
        %v421 = vld [vmem:[%s242 + $0x20] sm:$0xff]
        %426 = vrot.lane.b32.xlu0 %v418, 111
        %v427 = vpop.permute.xlu0 %426
        %428 = vrot.lane.b32.xlu0 %v419, 111
        %v429 = vpop.permute.xlu0 %428
        %430 = vrot.lane.b32.xlu0 %v420, 111
        %v431 = vpop.permute.xlu0 %430
        %432 = vrot.lane.b32.xlu0 %v421, 111
        %v433 = vpop.permute.xlu0 %432
        %vm434 = vcmask 908288
        %v435 = vsel %vm434, %v427, %v429
        %v436 = vsel %vm434, %v429, %v431
        %v437 = vsel %vm434, %v431, %v433
        %441 = vst [vmem:[#allocation2 + $0x90] sm:$0xff] %v435
        %442 = vst [vmem:[#allocation2 + $0x98] sm:$0xff] %v436
        %443 = vst [vmem:[#allocation2 + $0xa0] sm:$0xff] %v437
        %v444 = vld [vmem:[%s242 + $0x8] sm:$0xff]
        %v445 = vld [vmem:[%s242 + $0x10] sm:$0xff]
        %v446 = vld [vmem:[%s242 + $0x18] sm:$0xff]
        %v447 = vld [vmem:[%s242 + $0x20] sm:$0xff]
        %452 = vrot.lane.b32.xlu0 %v444, 110
        %v453 = vpop.permute.xlu0 %452
        %454 = vrot.lane.b32.xlu0 %v445, 110
        %v455 = vpop.permute.xlu0 %454
        %456 = vrot.lane.b32.xlu0 %v446, 110
        %v457 = vpop.permute.xlu0 %456
        %458 = vrot.lane.b32.xlu0 %v447, 110
        %v459 = vpop.permute.xlu0 %458
        %vm460 = vcmask 900096
        %v461 = vsel %vm460, %v453, %v455
        %v462 = vsel %vm460, %v455, %v457
        %v463 = vsel %vm460, %v457, %v459
        %467 = vst [vmem:[#allocation2 + $0xa8] sm:$0xff] %v461
        %468 = vst [vmem:[#allocation2 + $0xb0] sm:$0xff] %v462
        %469 = vst [vmem:[#allocation2 + $0xb8] sm:$0xff] %v463
        %v470 = vld [vmem:[%s242 + $0x8] sm:$0xff]
        %v471 = vld [vmem:[%s242 + $0x10] sm:$0xff]
        %v472 = vld [vmem:[%s242 + $0x18] sm:$0xff]
        %v473 = vld [vmem:[%s242 + $0x20] sm:$0xff]
        %478 = vrot.lane.b32.xlu0 %v470, 109
        %v479 = vpop.permute.xlu0 %478
        %480 = vrot.lane.b32.xlu0 %v471, 109
        %v481 = vpop.permute.xlu0 %480
        %482 = vrot.lane.b32.xlu0 %v472, 109
        %v483 = vpop.permute.xlu0 %482
        %484 = vrot.lane.b32.xlu0 %v473, 109
        %v485 = vpop.permute.xlu0 %484
        %vm486 = vcmask 891904
        %v487 = vsel %vm486, %v479, %v481
        %v488 = vsel %vm486, %v481, %v483
        %v489 = vsel %vm486, %v483, %v485
        %493 = vst [vmem:[#allocation2 + $0xc0] sm:$0xff] %v487
        %494 = vst [vmem:[#allocation2 + $0xc8] sm:$0xff] %v488
        %495 = vst [vmem:[#allocation2 + $0xd0] sm:$0xff] %v489
        %v496 = vld [vmem:[#allocation7] sm:$0xff]
        %v497 = vld [vmem:[#allocation7 + $0x8] sm:$0xff]
        %v498 = vld [vmem:[#allocation2] sm:$0xff]
        %v499 = vld [vmem:[#allocation2 + $0x8] sm:$0xff]
        %v500 = vld [vmem:[#allocation2 + $0x10] sm:$0xff]
        %v501 = vld [vmem:[#allocation2 + $0x18] sm:$0xff]
        %v502 = vld [vmem:[#allocation2 + $0x20] sm:$0xff]
        %v503 = vld [vmem:[#allocation2 + $0x28] sm:$0xff]
        %v504 = vld [vmem:[#allocation2 + $0x30] sm:$0xff]
        %v505 = vld [vmem:[#allocation2 + $0x38] sm:$0xff]
        %v506 = vld [vmem:[#allocation2 + $0x40] sm:$0xff]
        %v507 = vld [vmem:[#allocation2 + $0x48] sm:$0xff]
        %v508 = vld [vmem:[#allocation2 + $0x50] sm:$0xff]
        %v509 = vld [vmem:[#allocation2 + $0x58] sm:$0xff]
        %v510 = vld [vmem:[#allocation2 + $0x60] sm:$0xff]
        %v511 = vld [vmem:[#allocation2 + $0x68] sm:$0xff]
        %v512 = vld [vmem:[#allocation2 + $0x70] sm:$0xff]
        %v513 = vld [vmem:[#allocation2 + $0x78] sm:$0xff]
        %v514 = vld [vmem:[#allocation2 + $0x80] sm:$0xff]
        %v515 = vld [vmem:[#allocation2 + $0x88] sm:$0xff]
        %v516 = vld [vmem:[#allocation2 + $0x90] sm:$0xff]
        %v517 = vld [vmem:[#allocation2 + $0x98] sm:$0xff]
        %v518 = vld [vmem:[#allocation2 + $0xa0] sm:$0xff]
        %v519 = vld [vmem:[#allocation2 + $0xa8] sm:$0xff]
        %v520 = vld [vmem:[#allocation2 + $0xb0] sm:$0xff]
        %v521 = vld [vmem:[#allocation2 + $0xb8] sm:$0xff]
        %v522 = vld [vmem:[#allocation2 + $0xc0] sm:$0xff]
        %v523 = vld [vmem:[#allocation2 + $0xc8] sm:$0xff]
        %v524 = vld [vmem:[#allocation2 + $0xd0] sm:$0xff]
        %vm525 = vcmask 588800
        %v527 = vsel %vm525, %v496, 0
        %v530 = vsel %vm525, %v497, 0
        %532 = vmatprep.subr.mxu0 0.0
        %533 = vmatpush1.msra.mxu0 0.0
        %534 = vmatprep.subr.mxu0 0.0
        %535 = vmatpush1.msra.mxu0 0.0
        %536 = vmatprep.subr.mxu0 0.0
        %537 = vmatpush1.msra.mxu0 0.0
        %538 = vmatprep.subr.mxu0 0.0
        %539 = vmatpush1.msra.mxu0 0.0
        %540 = vmatprep.subr.mxu0 0.0
        %541 = vmatpush1.msra.mxu0 0.0
        %542 = vmatprep.subr.mxu0 0.0
        %543 = vmatpush1.msra.mxu0 0.0
        %544 = vmatprep.subr.mxu0 0.0
        %545 = vmatpush1.msra.mxu0 0.0
        %546 = vmatprep.subr.mxu0 %v523
        %547 = vmatpush1.msra.mxu0 %v522
        %548 = vmatprep.subr.mxu0 %v520
        %549 = vmatpush1.msra.mxu0 %v519
        %550 = vmatprep.subr.mxu0 %v517
        %551 = vmatpush1.msra.mxu0 %v516
        %552 = vmatprep.subr.mxu0 %v514
        %553 = vmatpush1.msra.mxu0 %v513
        %554 = vmatprep.subr.mxu0 %v511
        %555 = vmatpush1.msra.mxu0 %v510
        %556 = vmatprep.subr.mxu0 %v508
        %557 = vmatpush1.msra.mxu0 %v507
        %558 = vmatprep.subr.mxu0 %v505
        %559 = vmatpush1.msra.mxu0 %v504
        %560 = vmatprep.subr.mxu0 %v502
        %561 = vmatpush1.msra.mxu0 %v501
        %562 = vmatprep.subr.mxu0 %v499
        %563 = vmatpush1.msra.mxu0 %v498
        %564 = vmatprep.subr.mxu0 0.0
        %565 = vmatpush2.msra.mxu0 0.0
        %566 = vmatprep.subr.mxu0 0.0
        %567 = vmatpush2.msra.mxu0 0.0
        %568 = vmatprep.subr.mxu0 0.0
        %569 = vmatpush2.msra.mxu0 0.0
        %570 = vmatprep.subr.mxu0 0.0
        %571 = vmatpush2.msra.mxu0 0.0
        %572 = vmatprep.subr.mxu0 0.0
        %573 = vmatpush2.msra.mxu0 0.0
        %574 = vmatprep.subr.mxu0 0.0
        %575 = vmatpush2.msra.mxu0 0.0
        %576 = vmatprep.subr.mxu0 0.0
        %577 = vmatpush2.msra.mxu0 0.0
        %578 = vmatprep.subr.mxu0 0.0
        %579 = vmatpush2.msra.mxu0 0.0
        %580 = vmatprep.subr.mxu0 0.0
        %581 = vmatpush2.msra.mxu0 0.0
        %582 = vmatprep.subr.mxu0 0.0
        %583 = vmatpush2.msra.mxu0 0.0
        %584 = vmatprep.subr.mxu0 0.0
        %585 = vmatpush2.msra.mxu0 0.0
        %586 = vmatprep.subr.mxu0 0.0
        %587 = vmatpush2.msra.mxu0 0.0
        %588 = vmatprep.subr.mxu0 0.0
        %589 = vmatpush2.msra.mxu0 0.0
        %590 = vmatprep.subr.mxu0 0.0
        %591 = vmatpush2.msra.mxu0 0.0
        %592 = vmatprep.subr.mxu0 0.0
        %593 = vmatpush2.msra.mxu0 0.0
        %594 = vmatprep.subr.mxu0 0.0
        %595 = vmatpush2.msra.mxu0 0.0
        %596 = vmatprep.mubr.f32.mxu0 0.0
        %597 = vmatmul.mubr.f32.gmra.mxu0 %v527
        %v598 = vpop.f32.mrf.mxu0
        %v599 = vadd.f32 0.0, %v598
        %v600 = vpop.f32.mrf.mxu0
        %v601 = vadd.f32 0.0, %v600
        %602 = vmatprep.mubr.f32.mxu0 0.0
        %603 = vmatmul.mubr.f32.gmra.mxu0 %v530
        %v604 = vpop.f32.mrf.mxu0
        %v605 = vadd.f32 0.0, %v604
        %v606 = vpop.f32.mrf.mxu0
        %v607 = vadd.f32 0.0, %v606
        %608 = vdwg.mxu0
        %609 = vmatprep.subr.mxu0 0.0
        %610 = vmatpush1.msra.mxu0 0.0
        %611 = vmatprep.subr.mxu0 0.0
        %612 = vmatpush1.msra.mxu0 0.0
        %613 = vmatprep.subr.mxu0 0.0
        %614 = vmatpush1.msra.mxu0 0.0
        %615 = vmatprep.subr.mxu0 0.0
        %616 = vmatpush1.msra.mxu0 0.0
        %617 = vmatprep.subr.mxu0 0.0
        %618 = vmatpush1.msra.mxu0 0.0
        %619 = vmatprep.subr.mxu0 0.0
        %620 = vmatpush1.msra.mxu0 0.0
        %621 = vmatprep.subr.mxu0 0.0
        %622 = vmatpush1.msra.mxu0 0.0
        %623 = vmatprep.subr.mxu0 0.0
        %624 = vmatpush1.msra.mxu0 %v524
        %625 = vmatprep.subr.mxu0 0.0
        %626 = vmatpush1.msra.mxu0 %v521
        %627 = vmatprep.subr.mxu0 0.0
        %628 = vmatpush1.msra.mxu0 %v518
        %629 = vmatprep.subr.mxu0 0.0
        %630 = vmatpush1.msra.mxu0 %v515
        %631 = vmatprep.subr.mxu0 0.0
        %632 = vmatpush1.msra.mxu0 %v512
        %633 = vmatprep.subr.mxu0 0.0
        %634 = vmatpush1.msra.mxu0 %v509
        %635 = vmatprep.subr.mxu0 0.0
        %636 = vmatpush1.msra.mxu0 %v506
        %637 = vmatprep.subr.mxu0 0.0
        %638 = vmatpush1.msra.mxu0 %v503
        %639 = vmatprep.subr.mxu0 0.0
        %640 = vmatpush1.msra.mxu0 %v500
        %641 = vmatprep.subr.mxu0 0.0
        %642 = vmatpush2.msra.mxu0 0.0
        %643 = vmatprep.subr.mxu0 0.0
        %644 = vmatpush2.msra.mxu0 0.0
        %645 = vmatprep.subr.mxu0 0.0
        %646 = vmatpush2.msra.mxu0 0.0
        %647 = vmatprep.subr.mxu0 0.0
        %648 = vmatpush2.msra.mxu0 0.0
        %649 = vmatprep.subr.mxu0 0.0
        %650 = vmatpush2.msra.mxu0 0.0
        %651 = vmatprep.subr.mxu0 0.0
        %652 = vmatpush2.msra.mxu0 0.0
        %653 = vmatprep.subr.mxu0 0.0
        %654 = vmatpush2.msra.mxu0 0.0
        %655 = vmatprep.subr.mxu0 0.0
        %656 = vmatpush2.msra.mxu0 0.0
        %657 = vmatprep.subr.mxu0 0.0
        %658 = vmatpush2.msra.mxu0 0.0
        %659 = vmatprep.subr.mxu0 0.0
        %660 = vmatpush2.msra.mxu0 0.0
        %661 = vmatprep.subr.mxu0 0.0
        %662 = vmatpush2.msra.mxu0 0.0
        %663 = vmatprep.subr.mxu0 0.0
        %664 = vmatpush2.msra.mxu0 0.0
        %665 = vmatprep.subr.mxu0 0.0
        %666 = vmatpush2.msra.mxu0 0.0
        %667 = vmatprep.subr.mxu0 0.0
        %668 = vmatpush2.msra.mxu0 0.0
        %669 = vmatprep.subr.mxu0 0.0
        %670 = vmatpush2.msra.mxu0 0.0
        %671 = vmatprep.subr.mxu0 0.0
        %672 = vmatpush2.msra.mxu0 0.0
        %673 = vmatprep.mubr.f32.mxu0 0.0
        %674 = vmatmul.mubr.f32.gmra.mxu0 %v527
        %v675 = vpop.f32.mrf.mxu0
        %v676 = vadd.f32 0.0, %v675
        %v677 = vpop.f32.mrf.mxu0
        %678 = vmatprep.mubr.f32.mxu0 0.0
        %679 = vmatmul.mubr.f32.gmra.mxu0 %v530
        %v680 = vpop.f32.mrf.mxu0
        %v681 = vadd.f32 0.0, %v680
        %v682 = vpop.f32.mrf.mxu0
        %683 = vdwg.mxu0
        %685 = vset.pattern.permute.xlu0 0
        %686 = vperm.xlu0 %685, %v281
        %v687 = vpop.permute.xlu0 %686
        %v689 = vadd.f32 %v599, %v687
        %v690 = vadd.f32 %v601, %v687
        %v691 = vadd.f32 %v676, %v687
        %vm692 = vcmp.ge.f32.partialorder %v689, 0.0
        %vm693 = vcmp.ge.f32.partialorder %v690, 0.0
        %vm694 = vcmp.ge.f32.partialorder %v691, 0.0
        %695 = vset.pattern.permute.xlu0 1
        %696 = vperm.xlu0 %695, %v281
        %v697 = vpop.permute.xlu0 %696
        %v699 = vmul.f32 %v697, %v689
        %v700 = vmul.f32 %v697, %v690
        %v701 = vmul.f32 %v697, %v691
        %v702 = vsel %vm692, %v689, %v699
        %v703 = vsel %vm693, %v690, %v700
        %v704 = vsel %vm694, %v691, %v701
        %705 = vst [vmem:[#allocation3] sm:$0xff] 0.0
        %706 = vst [vmem:[#allocation3 + $0x20] sm:$0xff] 0.0
        %v707 = vld [vmem:[%s4] sm:$0x7]
        %v709 = vlaneseq
        %v710 = vshrl.u32 %v709, 7
        %v711 = vsub.s32 0, %v710
        %v712 = vrot.slane %v707, %v711
        %v713 = vlaneseq
        %v714 = vshrl.u32 %v713, 7
        %v715 = vsub.s32 1, %v714
        %v716 = vrot.slane %v707, %v715
        %v717 = vlaneseq
        %v718 = vshrl.u32 %v717, 7
        %v719 = vsub.s32 2, %v718
        %v720 = vrot.slane %v707, %v719
        %v724 = vmul.f32 %v702, %v712
        %v725 = vmul.f32 %v703, %v716
        %v726 = vmul.f32 %v704, %v720
        %727 = vst [vmem:[#allocation3 + $0x8] sm:$0xff] %v724
        %728 = vst [vmem:[#allocation3 + $0x10] sm:$0xff] %v725
        %729 = vst [vmem:[#allocation3 + $0x18] sm:$0xff] %v726
        %v730 = vld [vmem:[#allocation3] sm:$0xff]
        %v731 = vld [vmem:[#allocation3 + $0x8] sm:$0xff]
        %v732 = vld [vmem:[#allocation3 + $0x10] sm:$0xff]
        %v733 = vld [vmem:[#allocation3 + $0x18] sm:$0xff]
        %738 = vrot.lane.b32.xlu0 %v730, 19
        %v739 = vpop.permute.xlu0 %738
        %740 = vrot.lane.b32.xlu0 %v731, 19
        %v741 = vpop.permute.xlu0 %740
        %742 = vrot.lane.b32.xlu0 %v732, 19
        %v743 = vpop.permute.xlu0 %742
        %744 = vrot.lane.b32.xlu0 %v733, 19
        %v745 = vpop.permute.xlu0 %744
        %v746 = vsel %vm298, %v739, %v741
        %v747 = vsel %vm298, %v741, %v743
        %v748 = vsel %vm298, %v743, %v745
        %752 = vst [vmem:[#allocation2] sm:$0xff] %v746
        %753 = vst [vmem:[#allocation2 + $0x8] sm:$0xff] %v747
        %754 = vst [vmem:[#allocation2 + $0x10] sm:$0xff] %v748
        %v755 = vld [vmem:[#allocation3] sm:$0xff]
        %v756 = vld [vmem:[#allocation3 + $0x8] sm:$0xff]
        %v757 = vld [vmem:[#allocation3 + $0x10] sm:$0xff]
        %v758 = vld [vmem:[#allocation3 + $0x18] sm:$0xff]
        %763 = vrot.lane.b32.xlu0 %v755, 18
        %v764 = vpop.permute.xlu0 %763
        %765 = vrot.lane.b32.xlu0 %v756, 18
        %v766 = vpop.permute.xlu0 %765
        %767 = vrot.lane.b32.xlu0 %v757, 18
        %v768 = vpop.permute.xlu0 %767
        %769 = vrot.lane.b32.xlu0 %v758, 18
        %v770 = vpop.permute.xlu0 %769
        %v771 = vsel %vm324, %v764, %v766
        %v772 = vsel %vm324, %v766, %v768
        %v773 = vsel %vm324, %v768, %v770
        %777 = vst [vmem:[#allocation2 + $0x18] sm:$0xff] %v771
        %778 = vst [vmem:[#allocation2 + $0x20] sm:$0xff] %v772
        %779 = vst [vmem:[#allocation2 + $0x28] sm:$0xff] %v773
        %v780 = vld [vmem:[#allocation3] sm:$0xff]
        %v781 = vld [vmem:[#allocation3 + $0x8] sm:$0xff]
        %v782 = vld [vmem:[#allocation3 + $0x10] sm:$0xff]
        %v783 = vld [vmem:[#allocation3 + $0x18] sm:$0xff]
        %788 = vrot.lane.b32.xlu0 %v780, 17
        %v789 = vpop.permute.xlu0 %788
        %790 = vrot.lane.b32.xlu0 %v781, 17
        %v791 = vpop.permute.xlu0 %790
        %792 = vrot.lane.b32.xlu0 %v782, 17
        %v793 = vpop.permute.xlu0 %792
        %794 = vrot.lane.b32.xlu0 %v783, 17
        %v795 = vpop.permute.xlu0 %794
        %v796 = vsel %vm350, %v789, %v791
        %v797 = vsel %vm350, %v791, %v793
        %v798 = vsel %vm350, %v793, %v795
        %802 = vst [vmem:[#allocation2 + $0x30] sm:$0xff] %v796
        %803 = vst [vmem:[#allocation2 + $0x38] sm:$0xff] %v797
        %804 = vst [vmem:[#allocation2 + $0x40] sm:$0xff] %v798
        %v805 = vld [vmem:[#allocation3] sm:$0xff]
        %v806 = vld [vmem:[#allocation3 + $0x8] sm:$0xff]
        %v807 = vld [vmem:[#allocation3 + $0x10] sm:$0xff]
        %v808 = vld [vmem:[#allocation3 + $0x18] sm:$0xff]
        %813 = vrot.lane.b32.xlu0 %v805, 1
        %v814 = vpop.permute.xlu0 %813
        %815 = vrot.lane.b32.xlu0 %v806, 1
        %v816 = vpop.permute.xlu0 %815
        %817 = vrot.lane.b32.xlu0 %v807, 1
        %v818 = vpop.permute.xlu0 %817
        %819 = vrot.lane.b32.xlu0 %v808, 1
        %v820 = vpop.permute.xlu0 %819
        %v821 = vsel %vm376, %v814, %v816
        %v822 = vsel %vm376, %v816, %v818
        %v823 = vsel %vm376, %v818, %v820
        %827 = vst [vmem:[#allocation2 + $0x48] sm:$0xff] %v821
        %828 = vst [vmem:[#allocation2 + $0x50] sm:$0xff] %v822
        %829 = vst [vmem:[#allocation2 + $0x58] sm:$0xff] %v823
        %v830 = vld [vmem:[#allocation3 + $0x8] sm:$0xff]
        %v831 = vld [vmem:[#allocation3 + $0x10] sm:$0xff]
        %v832 = vld [vmem:[#allocation3 + $0x18] sm:$0xff]
        %833 = vst [vmem:[#allocation2 + $0x60] sm:$0xff] %v830
        %834 = vst [vmem:[#allocation2 + $0x68] sm:$0xff] %v831
        %835 = vst [vmem:[#allocation2 + $0x70] sm:$0xff] %v832
        %v836 = vld [vmem:[#allocation3 + $0x8] sm:$0xff]
        %v837 = vld [vmem:[#allocation3 + $0x10] sm:$0xff]
        %v838 = vld [vmem:[#allocation3 + $0x18] sm:$0xff]
        %v839 = vld [vmem:[#allocation3 + $0x20] sm:$0xff]
        %844 = vrot.lane.b32.xlu0 %v836, 127
        %v845 = vpop.permute.xlu0 %844
        %846 = vrot.lane.b32.xlu0 %v837, 127
        %v847 = vpop.permute.xlu0 %846
        %848 = vrot.lane.b32.xlu0 %v838, 127
        %v849 = vpop.permute.xlu0 %848
        %850 = vrot.lane.b32.xlu0 %v839, 127
        %v851 = vpop.permute.xlu0 %850
        %v852 = vsel %vm408, %v845, %v847
        %v853 = vsel %vm408, %v847, %v849
        %v854 = vsel %vm408, %v849, %v851
        %858 = vst [vmem:[#allocation2 + $0x78] sm:$0xff] %v852
        %859 = vst [vmem:[#allocation2 + $0x80] sm:$0xff] %v853
        %860 = vst [vmem:[#allocation2 + $0x88] sm:$0xff] %v854
        %v861 = vld [vmem:[#allocation3 + $0x8] sm:$0xff]
        %v862 = vld [vmem:[#allocation3 + $0x10] sm:$0xff]
        %v863 = vld [vmem:[#allocation3 + $0x18] sm:$0xff]
        %v864 = vld [vmem:[#allocation3 + $0x20] sm:$0xff]
        %869 = vrot.lane.b32.xlu0 %v861, 111
        %v870 = vpop.permute.xlu0 %869
        %871 = vrot.lane.b32.xlu0 %v862, 111
        %v872 = vpop.permute.xlu0 %871
        %873 = vrot.lane.b32.xlu0 %v863, 111
        %v874 = vpop.permute.xlu0 %873
        %875 = vrot.lane.b32.xlu0 %v864, 111
        %v876 = vpop.permute.xlu0 %875
        %v877 = vsel %vm434, %v870, %v872
        %v878 = vsel %vm434, %v872, %v874
        %v879 = vsel %vm434, %v874, %v876
        %883 = vst [vmem:[#allocation2 + $0x90] sm:$0xff] %v877
        %884 = vst [vmem:[#allocation2 + $0x98] sm:$0xff] %v878
        %885 = vst [vmem:[#allocation2 + $0xa0] sm:$0xff] %v879
        %v886 = vld [vmem:[#allocation3 + $0x8] sm:$0xff]
        %v887 = vld [vmem:[#allocation3 + $0x10] sm:$0xff]
        %v888 = vld [vmem:[#allocation3 + $0x18] sm:$0xff]
        %v889 = vld [vmem:[#allocation3 + $0x20] sm:$0xff]
        %894 = vrot.lane.b32.xlu0 %v886, 110
        %v895 = vpop.permute.xlu0 %894
        %896 = vrot.lane.b32.xlu0 %v887, 110
        %v897 = vpop.permute.xlu0 %896
        %898 = vrot.lane.b32.xlu0 %v888, 110
        %v899 = vpop.permute.xlu0 %898
        %900 = vrot.lane.b32.xlu0 %v889, 110
        %v901 = vpop.permute.xlu0 %900
        %v902 = vsel %vm460, %v895, %v897
        %v903 = vsel %vm460, %v897, %v899
        %v904 = vsel %vm460, %v899, %v901
        %908 = vst [vmem:[#allocation2 + $0xa8] sm:$0xff] %v902
        %909 = vst [vmem:[#allocation2 + $0xb0] sm:$0xff] %v903
        %910 = vst [vmem:[#allocation2 + $0xb8] sm:$0xff] %v904
        %v911 = vld [vmem:[#allocation3 + $0x8] sm:$0xff]
        %v912 = vld [vmem:[#allocation3 + $0x10] sm:$0xff]
        %v913 = vld [vmem:[#allocation3 + $0x18] sm:$0xff]
        %v914 = vld [vmem:[#allocation3 + $0x20] sm:$0xff]
        %919 = vrot.lane.b32.xlu0 %v911, 109
        %v920 = vpop.permute.xlu0 %919
        %921 = vrot.lane.b32.xlu0 %v912, 109
        %v922 = vpop.permute.xlu0 %921
        %923 = vrot.lane.b32.xlu0 %v913, 109
        %v924 = vpop.permute.xlu0 %923
        %925 = vrot.lane.b32.xlu0 %v914, 109
        %v926 = vpop.permute.xlu0 %925
        %v927 = vsel %vm486, %v920, %v922
        %v928 = vsel %vm486, %v922, %v924
        %v929 = vsel %vm486, %v924, %v926
        %933 = vst [vmem:[#allocation2 + $0xc0] sm:$0xff] %v927
        %934 = vst [vmem:[#allocation2 + $0xc8] sm:$0xff] %v928
        %935 = vst [vmem:[#allocation2 + $0xd0] sm:$0xff] %v929
        %v936 = vld [vmem:[#allocation9] sm:$0xff]
        %v937 = vld [vmem:[#allocation2] sm:$0xff]
        %v938 = vld [vmem:[#allocation2 + $0x8] sm:$0xff]
        %v939 = vld [vmem:[#allocation2 + $0x10] sm:$0xff]
        %v940 = vld [vmem:[#allocation2 + $0x18] sm:$0xff]
        %v941 = vld [vmem:[#allocation2 + $0x20] sm:$0xff]
        %v942 = vld [vmem:[#allocation2 + $0x28] sm:$0xff]
        %v943 = vld [vmem:[#allocation2 + $0x30] sm:$0xff]
        %v944 = vld [vmem:[#allocation2 + $0x38] sm:$0xff]
        %v945 = vld [vmem:[#allocation2 + $0x40] sm:$0xff]
        %v946 = vld [vmem:[#allocation2 + $0x48] sm:$0xff]
        %v947 = vld [vmem:[#allocation2 + $0x50] sm:$0xff]
        %v948 = vld [vmem:[#allocation2 + $0x58] sm:$0xff]
        %v949 = vld [vmem:[#allocation2 + $0x60] sm:$0xff]
        %v950 = vld [vmem:[#allocation2 + $0x68] sm:$0xff]
        %v951 = vld [vmem:[#allocation2 + $0x70] sm:$0xff]
        %v952 = vld [vmem:[#allocation2 + $0x78] sm:$0xff]
        %v953 = vld [vmem:[#allocation2 + $0x80] sm:$0xff]
        %v954 = vld [vmem:[#allocation2 + $0x88] sm:$0xff]
        %v955 = vld [vmem:[#allocation2 + $0x90] sm:$0xff]
        %v956 = vld [vmem:[#allocation2 + $0x98] sm:$0xff]
        %v957 = vld [vmem:[#allocation2 + $0xa0] sm:$0xff]
        %v958 = vld [vmem:[#allocation2 + $0xa8] sm:$0xff]
        %v959 = vld [vmem:[#allocation2 + $0xb0] sm:$0xff]
        %v960 = vld [vmem:[#allocation2 + $0xb8] sm:$0xff]
        %v961 = vld [vmem:[#allocation2 + $0xc0] sm:$0xff]
        %v962 = vld [vmem:[#allocation2 + $0xc8] sm:$0xff]
        %v963 = vld [vmem:[#allocation2 + $0xd0] sm:$0xff]
        %964 = vset.pattern.permute.xlu0 2
        %965 = vperm.xlu0 %964, %v281
        %v966 = vpop.permute.xlu0 %965
        %v969 = vsel %vm525, %v936, 0
        %971 = vmatprep.subr.mxu0 0.0
        %972 = vmatpush1.msra.mxu0 0.0
        %973 = vmatprep.subr.mxu0 0.0
        %974 = vmatpush1.msra.mxu0 0.0
        %975 = vmatprep.subr.mxu0 0.0
        %976 = vmatpush1.msra.mxu0 0.0
        %977 = vmatprep.subr.mxu0 0.0
        %978 = vmatpush1.msra.mxu0 0.0
        %979 = vmatprep.subr.mxu0 0.0
        %980 = vmatpush1.msra.mxu0 0.0
        %981 = vmatprep.subr.mxu0 0.0
        %982 = vmatpush1.msra.mxu0 0.0
        %983 = vmatprep.subr.mxu0 0.0
        %984 = vmatpush1.msra.mxu0 0.0
        %985 = vmatprep.subr.mxu0 %v962
        %986 = vmatpush1.msra.mxu0 %v961
        %987 = vmatprep.subr.mxu0 %v959
        %988 = vmatpush1.msra.mxu0 %v958
        %989 = vmatprep.subr.mxu0 %v956
        %990 = vmatpush1.msra.mxu0 %v955
        %991 = vmatprep.subr.mxu0 %v953
        %992 = vmatpush1.msra.mxu0 %v952
        %993 = vmatprep.subr.mxu0 %v950
        %994 = vmatpush1.msra.mxu0 %v949
        %995 = vmatprep.subr.mxu0 %v947
        %996 = vmatpush1.msra.mxu0 %v946
        %997 = vmatprep.subr.mxu0 %v944
        %998 = vmatpush1.msra.mxu0 %v943
        %999 = vmatprep.subr.mxu0 %v941
        %1000 = vmatpush1.msra.mxu0 %v940
        %1001 = vmatprep.subr.mxu0 %v938
        %1002 = vmatpush1.msra.mxu0 %v937
        %1003 = vmatprep.subr.mxu0 0.0
        %1004 = vmatpush2.msra.mxu0 0.0
        %1005 = vmatprep.subr.mxu0 0.0
        %1006 = vmatpush2.msra.mxu0 0.0
        %1007 = vmatprep.subr.mxu0 0.0
        %1008 = vmatpush2.msra.mxu0 0.0
        %1009 = vmatprep.subr.mxu0 0.0
        %1010 = vmatpush2.msra.mxu0 0.0
        %1011 = vmatprep.subr.mxu0 0.0
        %1012 = vmatpush2.msra.mxu0 0.0
        %1013 = vmatprep.subr.mxu0 0.0
        %1014 = vmatpush2.msra.mxu0 0.0
        %1015 = vmatprep.subr.mxu0 0.0
        %1016 = vmatpush2.msra.mxu0 0.0
        %1017 = vmatprep.subr.mxu0 0.0
        %1018 = vmatpush2.msra.mxu0 0.0
        %1019 = vmatprep.subr.mxu0 0.0
        %1020 = vmatpush2.msra.mxu0 0.0
        %1021 = vmatprep.subr.mxu0 0.0
        %1022 = vmatpush2.msra.mxu0 0.0
        %1023 = vmatprep.subr.mxu0 0.0
        %1024 = vmatpush2.msra.mxu0 0.0
        %1025 = vmatprep.subr.mxu0 0.0
        %1026 = vmatpush2.msra.mxu0 0.0
        %1027 = vmatprep.subr.mxu0 0.0
        %1028 = vmatpush2.msra.mxu0 0.0
        %1029 = vmatprep.subr.mxu0 0.0
        %1030 = vmatpush2.msra.mxu0 0.0
        %1031 = vmatprep.subr.mxu0 0.0
        %1032 = vmatpush2.msra.mxu0 0.0
        %1033 = vmatprep.subr.mxu0 0.0
        %1034 = vmatpush2.msra.mxu0 0.0
        %1035 = vmatprep.mubr.f32.mxu0 0.0
        %1036 = vmatmul.mubr.f32.gmra.mxu0 %v969
        %v1037 = vpop.f32.mrf.mxu0
        %v1038 = vadd.f32 %v966, %v1037
        %v1039 = vpop.f32.mrf.mxu0
        %v1040 = vadd.f32 %v966, %v1039
        %1041 = vdwg.mxu0
        %1042 = vmatprep.subr.mxu0 0.0
        %1043 = vmatpush1.msra.mxu0 0.0
        %1044 = vmatprep.subr.mxu0 0.0
        %1045 = vmatpush1.msra.mxu0 0.0
        %1046 = vmatprep.subr.mxu0 0.0
        %1047 = vmatpush1.msra.mxu0 0.0
        %1048 = vmatprep.subr.mxu0 0.0
        %1049 = vmatpush1.msra.mxu0 0.0
        %1050 = vmatprep.subr.mxu0 0.0
        %1051 = vmatpush1.msra.mxu0 0.0
        %1052 = vmatprep.subr.mxu0 0.0
        %1053 = vmatpush1.msra.mxu0 0.0
        %1054 = vmatprep.subr.mxu0 0.0
        %1055 = vmatpush1.msra.mxu0 0.0
        %1056 = vmatprep.subr.mxu0 0.0
        %1057 = vmatpush1.msra.mxu0 %v963
        %1058 = vmatprep.subr.mxu0 0.0
        %1059 = vmatpush1.msra.mxu0 %v960
        %1060 = vmatprep.subr.mxu0 0.0
        %1061 = vmatpush1.msra.mxu0 %v957
        %1062 = vmatprep.subr.mxu0 0.0
        %1063 = vmatpush1.msra.mxu0 %v954
        %1064 = vmatprep.subr.mxu0 0.0
        %1065 = vmatpush1.msra.mxu0 %v951
        %1066 = vmatprep.subr.mxu0 0.0
        %1067 = vmatpush1.msra.mxu0 %v948
        %1068 = vmatprep.subr.mxu0 0.0
        %1069 = vmatpush1.msra.mxu0 %v945
        %1070 = vmatprep.subr.mxu0 0.0
        %1071 = vmatpush1.msra.mxu0 %v942
        %1072 = vmatprep.subr.mxu0 0.0
        %1073 = vmatpush1.msra.mxu0 %v939
        %1074 = vmatprep.subr.mxu0 0.0
        %1075 = vmatpush2.msra.mxu0 0.0
        %1076 = vmatprep.subr.mxu0 0.0
        %1077 = vmatpush2.msra.mxu0 0.0
        %1078 = vmatprep.subr.mxu0 0.0
        %1079 = vmatpush2.msra.mxu0 0.0
        %1080 = vmatprep.subr.mxu0 0.0
        %1081 = vmatpush2.msra.mxu0 0.0
        %1082 = vmatprep.subr.mxu0 0.0
        %1083 = vmatpush2.msra.mxu0 0.0
        %1084 = vmatprep.subr.mxu0 0.0
        %1085 = vmatpush2.msra.mxu0 0.0
        %1086 = vmatprep.subr.mxu0 0.0
        %1087 = vmatpush2.msra.mxu0 0.0
        %1088 = vmatprep.subr.mxu0 0.0
        %1089 = vmatpush2.msra.mxu0 0.0
        %1090 = vmatprep.subr.mxu0 0.0
        %1091 = vmatpush2.msra.mxu0 0.0
        %1092 = vmatprep.subr.mxu0 0.0
        %1093 = vmatpush2.msra.mxu0 0.0
        %1094 = vmatprep.subr.mxu0 0.0
        %1095 = vmatpush2.msra.mxu0 0.0
        %1096 = vmatprep.subr.mxu0 0.0
        %1097 = vmatpush2.msra.mxu0 0.0
        %1098 = vmatprep.subr.mxu0 0.0
        %1099 = vmatpush2.msra.mxu0 0.0
        %1100 = vmatprep.subr.mxu0 0.0
        %1101 = vmatpush2.msra.mxu0 0.0
        %1102 = vmatprep.subr.mxu0 0.0
        %1103 = vmatpush2.msra.mxu0 0.0
        %1104 = vmatprep.subr.mxu0 0.0
        %1105 = vmatpush2.msra.mxu0 0.0
        %1106 = vmatprep.mubr.f32.mxu0 0.0
        %1107 = vmatmul.mubr.f32.gmra.mxu0 %v969
        %v1108 = vpop.f32.mrf.mxu0
        %v1109 = vadd.f32 %v966, %v1108
        %v1110 = vpop.f32.mrf.mxu0
        %1111 = vdwg.mxu0
        %vm1112 = vcmp.ge.f32.partialorder %v1038, 0.0
        %vm1113 = vcmp.ge.f32.partialorder %v1040, 0.0
        %vm1114 = vcmp.ge.f32.partialorder %v1109, 0.0
        %1115 = vset.pattern.permute.xlu0 3
        %1116 = vperm.xlu0 %1115, %v281
        %v1117 = vpop.permute.xlu0 %1116
        %v1119 = vmul.f32 %v1117, %v1038
        %v1120 = vmul.f32 %v1117, %v1040
        %v1121 = vmul.f32 %v1117, %v1109
        %v1122 = vsel %vm1112, %v1038, %v1119
        %v1123 = vsel %vm1113, %v1040, %v1120
        %v1124 = vsel %vm1114, %v1109, %v1121
        %1125 = vset.pattern.permute.xlu0 4
        %1126 = vperm.xlu0 %1125, %v281
        %v1127 = vpop.permute.xlu0 %1126
        %v1129 = vmul.f32 %v1122, %v1127
        %v1130 = vmul.f32 %v1123, %v1127
        %v1131 = vmul.f32 %v1124, %v1127
        %v1132 = vadd.f32 %v1129, %v605
        %v1133 = vadd.f32 %v1130, %v607
        %v1134 = vadd.f32 %v1131, %v681
        %1135 = vset.pattern.permute.xlu0 5
        %1136 = vperm.xlu0 %1135, %v281
        %v1137 = vpop.permute.xlu0 %1136
        %v1139 = vadd.f32 %v1132, %v1137
        %v1140 = vadd.f32 %v1133, %v1137
        %v1141 = vadd.f32 %v1134, %v1137
        %1142 = vst [vmem:[%s280] sm:$0xff] %v1139
        %1143 = vst [vmem:[%s280 + $0x8] sm:$0xff] %v1140
        %1144 = vst [vmem:[%s280 + $0x10] sm:$0xff] %v1141
        %s1145 = sand.u32 %s142, 1
        %s1146 = scalar_lea.sflag [#allocation6], %s1145
        %s1147 = sand.u32 %s142, 1
        %s1148 = smul.addr %s1147, 24
        %s1149 = scalar_lea.vmem [#allocation12], %s1148
        // Predicated region
        $region57: #{tpu_custom_call.1} parent=39 // pred_check
          %p1150 = pneg %p152
        $region58: #{tpu_custom_call.1} parent=39 // pred_check_branch
          %1152 = sbr.rel (%p1150) target = $region60
        $region59: #{tpu_custom_call.1} parent=39 // pred_region
          %s1154 = ssub.s32 384, 384
          %1155 = vsyncadd %s1146, %s1154
          %s1156 = smul.addr %s24, 3
          %s1157 = smul.addr %s1156, 128
          %s1158 = scalar_lea.hbm %s5, %s1157
          %s1160 = sshll.u32 %s1149, 4
          %s1161 = int_to_ptr.vmem [resolvable:$true] %s1160
          %1163 = dma.vmem_to_hbm [thread:$0]  %s1161, 384, %s1158, %s1146
        $region60: #{tpu_custom_call.1} parent=39 // pred_fallthru
          _
      $region40: #{tpu_custom_call.1} parent=5 // pred_fallthru
        _
      %p1164 = scmp.le.s32.totalorder 2, %s19
      // Predicated region
      $region61: #{tpu_custom_call.1} parent=5 // pred_check
        %p1165 = pneg %p1164
      $region62: #{tpu_custom_call.1} parent=5 // pred_check_branch
        %1167 = sbr.rel (%p1165) target = $region64
      $region63: #{tpu_custom_call.1} parent=5 // pred_region
        %s1168 = ssub.s32 %s19, 2
        // Predicated region
        $region65: #{tpu_custom_call.1} parent=63 // pred_check
          %p1169 = pneg %p158
        $region66: #{tpu_custom_call.1} parent=63 // pred_check_branch
          %1171 = sbr.rel (%p1169) target = $region68
        $region67: #{tpu_custom_call.1} parent=63 // pred_region
          %s1172 = sand.u32 %s143, 1
          %s1173 = scalar_lea.sflag [#allocation6], %s1172
          %s1174 = sand.u32 %s143, 1
          %s1175 = smul.addr %s1174, 24
          %s1176 = scalar_lea.vmem [#allocation12], %s1175
          %1177 = dma.done %s1173, 384
        $region68: #{tpu_custom_call.1} parent=63 // pred_fallthru
          _
      $region64: #{tpu_custom_call.1} parent=5 // pred_fallthru
        _
    $region6: #{tpu_custom_call.1} parent=1 // loop_footer
      %s23 = sadd.s32 1, %s19
    $region7: #{tpu_custom_call.1} parent=1 // loop_footer_branch
      %18 = sbr.rel target = $region3
    $region8: #{tpu_custom_call.1} parent=1 // loop_exit
      _
    %1178 = vsyncpa [#allocation5], 1
    %s1179 = scalar_lea.sflag [#allocation5], 1
    %1180 = vsyncpa %s1179, 1
    %1181 = vsyncpa [#allocation8], 1
    %1182 = vsyncpa [#allocation11], 1
    %1183 = vsyncpa [#allocation6], 1
    %s1184 = scalar_lea.sflag [#allocation6], 1
    %1185 = vsyncpa %s1184, 1

</llo_original>
